<compile_context>
chip_gen: v7x
topology: tpu7x:2x2x1
jax: 0.10.0
libtpu: 0.0.40
codegen_flags: <defaults>
</compile_context>

<pallas_src>
import jax
import jax.numpy as jnp
from jax.experimental import pallas as pl
from jax.experimental.pallas import tpu as pltpu


def get_mesh(dim, steps):
    """torch-style folding mesh: meshgrid of linspace(-1,1,steps) over `dim`
    axes, stacked to shape (dim, steps**dim)."""
    axes = [jnp.linspace(-1.0, 1.0, steps, dtype=jnp.float32) for _ in range(dim)]
    grids = jnp.meshgrid(*axes, indexing="ij")
    return jnp.stack(grids, axis=0).reshape(dim, -1)


def _folding_kernel(x_ref, pos_t_ref, w1_ref, b1_ref, w2_ref, b2_ref,
                    w3t_ref, b3t_ref, o_ref):
    # FC1: (tm, d) @ (d, 128); bf16 MXU inputs, f32 accumulation.  The
    # constant mesh column's contribution is pre-folded into b1.
    h = jnp.dot(x_ref[...], w1_ref[...], preferred_element_type=jnp.float32)
    h = jnp.maximum(h + b1_ref[...], 0.0)
    # FC2: (tm, 128) @ (128, 64)
    h = jnp.dot(h.astype(jnp.bfloat16), w2_ref[...],
                preferred_element_type=jnp.float32)
    h = jnp.maximum(h + b2_ref[...], 0.0)
    # FC3 computed transposed so the output stays lane-dense:
    # (2, 64) x (tm, 64) contracted over 64 -> (2, tm)
    res_t = jax.lax.dot_general(
        w3t_ref[...], h.astype(jnp.bfloat16),
        dimension_numbers=(((1,), (1,)), ((), ())),
        preferred_element_type=jnp.float32)
    # upsampled = pos + residual (f32), written as full-lane (2, tm) tile.
    o_ref[...] = pos_t_ref[...] + res_t + b3t_ref[...]


def _choose_row_tile(m, max_tm=2048):
    """Row tile: multiple of 128, as big as possible (amortize per-step
    overhead) while keeping >=2 grid steps when the problem allows (v7x has
    2 TensorCores to shard the 'parallel' axis across)."""
    tm = max_tm
    while tm > 128 and m <= tm:
        tm //= 2
    return tm


def folding_pallas(x_flat, pos_t, params, max_tm=2048):
    """x_flat: (M, d) bf16, pos_t: (dout, M) f32 -> (dout, M) f32 = pos + MLP(x)."""
    M, d = x_flat.shape
    dout = pos_t.shape[0]
    w1, b1, w2, b2, w3t, b3t = params
    h1, h2 = w1.shape[1], w2.shape[1]

    tm = _choose_row_tile(M, max_tm)
    m_pad = pl.cdiv(M, tm) * tm
    if m_pad != M:                      # remainder handled by zero-pad + slice
        x_flat = jnp.pad(x_flat, ((0, m_pad - M), (0, 0)))
        pos_t = jnp.pad(pos_t, ((0, 0), (0, m_pad - M)))

    row = lambda i: (i, 0)
    col = lambda i: (0, i)
    full = lambda i: (0, 0)

    out_t = pl.pallas_call(
        _folding_kernel,
        out_shape=jax.ShapeDtypeStruct((dout, m_pad), jnp.float32),
        grid_spec=pltpu.PrefetchScalarGridSpec(
            num_scalar_prefetch=0,
            grid=(m_pad // tm,),
            in_specs=[
                pl.BlockSpec((tm, d), row),      # x tile (rows x features), bf16
                pl.BlockSpec((dout, tm), col),   # pos tile, transposed / lane-dense
                pl.BlockSpec((d, h1), full),     # W1 (mesh column folded into b1)
                pl.BlockSpec((1, h1), full),     # b1 (+ mesh_vec @ W1_mesh)
                pl.BlockSpec((h1, h2), full),    # W2
                pl.BlockSpec((1, h2), full),     # b2
                pl.BlockSpec((dout, h2), full),  # W3^T
                pl.BlockSpec((dout, 1), full),   # b3^T
            ],
            out_specs=pl.BlockSpec((dout, tm), col),
        ),
        # out = pos + residual has the same shape/dtype as pos_t: reuse its buffer.
        input_output_aliases={1: 0},
        compiler_params=pltpu.CompilerParams(
            dimension_semantics=("parallel",)),
    )(x_flat, pos_t, w1, b1, w2, b2, w3t, b3t)

    return out_t[:, :M] if m_pad != M else out_t


class Upsampling:
    def __init__(self, feature_dim, mesh_dim=1, mesh_steps=2,
                 use_random_mesh=False, activation="relu", *, key):
        assert activation == "relu"
        self.feature_dim = feature_dim
        self.mesh_dim = mesh_dim
        self.mesh_steps = mesh_steps
        self.mesh = get_mesh(dim=mesh_dim, steps=mesh_steps)  # (mesh_dim, steps**dim)
        self.use_random_mesh = use_random_mesh
        self.ratio = mesh_steps if use_random_mesh else mesh_steps ** mesh_dim

        # folding = FC(d+mesh_dim -> 128, relu) -> FC(128 -> 64, relu) -> FC(64 -> 2)
        dims = [feature_dim + mesh_dim, 128, 64, 2]
        params = []
        k = key
        for i in range(3):
            k, kw, kb = jax.random.split(k, 3)
            bound = 1.0 / jnp.sqrt(dims[i])
            w = jax.random.uniform(kw, (dims[i], dims[i + 1]), jnp.float32,
                                   -bound, bound)
            b = jax.random.uniform(kb, (1, dims[i + 1]), jnp.float32,
                                   -bound, bound)
            params += [w, b]
        self.params = tuple(params)   # original f32 parameterization (reference)

        if not use_random_mesh:
            # Reference forward's concat is only shape-consistent for ratio==1;
            # that is the configuration we implement (see module header).
            assert self.ratio == 1, "Upsampling kernel supports ratio == 1 only"
            w1, b1, w2, b2, w3, b3 = self.params
            # Kernel-side parameters:
            #  * weights cast to bf16 once (bf16-native MXU; f32 accumulate)
            #  * constant mesh column folded into b1 -> no concat, no extra
            #    (B, N, d+mesh_dim) HBM traffic
            #  * last layer stored transposed for the lane-dense (2, tm) output
            w1_bf16 = w1.astype(jnp.bfloat16)
            mesh_vec = self.mesh[:, 0]                               # (mesh_dim,)
            w1_mesh = w1_bf16[feature_dim:, :].astype(jnp.float32)   # (mesh_dim, 128)
            self.k_w1 = w1_bf16[:feature_dim, :]                     # (d, 128) bf16
            self.k_b1 = b1 + mesh_vec[None, :] @ w1_mesh             # (1, 128) f32
            self.k_w2 = w2.astype(jnp.bfloat16)                      # (128, 64) bf16
            self.k_b2 = b2                                           # (1, 64) f32
            self.k_w3t = w3.T.astype(jnp.bfloat16)                   # (2, 64) bf16
            self.k_b3t = b3.T                                        # (2, 1) f32

    def __call__(self, pos, x):
        # TODO(synk): use_random_mesh path (get_sample_points) not implemented;
        # only the deterministic registered mesh is supported here.
        assert not self.use_random_mesh
        B, N, d = x.shape
        assert d == self.feature_dim
        assert pos.shape[-1] == self.k_w3t.shape[0]   # folding head outputs 2
        M = B * N

        # Rows-major x, cast to bf16 (halves the dominant HBM read; in a real
        # pipeline the producer would already emit bf16).
        x_flat = x.reshape(M, d).astype(jnp.bfloat16)
        # pos presented transposed (2, M): the kernel's pos/out tiles become
        # (2, tm) -> lane-dense stores + contiguous DMA (dout=2 lanes would
        # otherwise force masked 2-of-128-lane stores).
        pos_t = jnp.transpose(pos.reshape(M, pos.shape[-1]))          # (2, M) f32

        out_t = folding_pallas(
            x_flat, pos_t,
            (self.k_w1, self.k_b1, self.k_w2, self.k_b2, self.k_w3t, self.k_b3t))
        return jnp.transpose(out_t).reshape(B, N, -1)


def _reference(pos, x, module):
    """Pure-JAX reference of the original forward (concat path), with the same
    bf16 quantization points as the kernel so the comparison isolates
    accumulation-order differences."""
    B, N, _ = x.shape
    mesh_tiled = jnp.transpose(jnp.repeat(module.mesh[:, :, None], N, axis=2),
                               (0, 2, 1)).reshape(1, -1, module.mesh_dim)
    mesh_tiled = jnp.tile(mesh_tiled, (B, 1, 1))
    xf = x.astype(jnp.bfloat16).astype(jnp.float32)
    h = jnp.concatenate([xf, mesh_tiled], axis=-1)
    w1, b1, w2, b2, w3, b3 = module.params
    w1f = w1.astype(jnp.bfloat16).astype(jnp.float32)
    w2f = w2.astype(jnp.bfloat16).astype(jnp.float32)
    w3f = w3.astype(jnp.bfloat16).astype(jnp.float32)
    h = jnp.maximum(h @ w1f + b1[0], 0.0)
    h = h.astype(jnp.bfloat16).astype(jnp.float32)
    h = jnp.maximum(h @ w2f + b2[0], 0.0)
    h = h.astype(jnp.bfloat16).astype(jnp.float32)
    return pos + (h @ w3f + b3[0])


if __name__ == "__main__":
    key = jax.random.PRNGKey(0)
    k_mod, k_pos, k_x = jax.random.split(key, 3)

    B, N = 2, 512
    feature_dim = 31              # folding input dim = feature_dim + mesh_dim = 32
    mesh_dim, mesh_steps = 1, 1   # ratio == 1: the only shape-consistent reference config

    module = Upsampling(feature_dim, mesh_dim=mesh_dim, mesh_steps=mesh_steps,
                        use_random_mesh=False, activation="relu", key=k_mod)

    pos = jax.random.normal(k_pos, (B, N, 2), jnp.float32)   # 2-D positions
    x = jax.random.normal(k_x, (B, N, feature_dim), jnp.float32)

    fwd = jax.jit(module.__call__)
    out = jax.block_until_ready(fwd(pos, x))

    ref = _reference(pos, x, module)
    assert out.shape == (B, N, 2), out.shape
    assert jnp.allclose(out, ref, rtol=1e-3, atol=1e-3), "mismatch vs reference"

    print("KERNEL_OK")
</pallas_src>

<mosaic_0001>
module attributes {stable_mosaic.version = 11 : i64} {
  func.func @_folding_kernel(%arg0: i32, %arg1: memref<512x31xbf16, #tpu.memory_space<vmem>>, %arg2: memref<2x512xf32, #tpu.memory_space<vmem>>, %arg3: memref<31x128xbf16, #tpu.memory_space<vmem>>, %arg4: memref<1x128xf32, #tpu.memory_space<vmem>>, %arg5: memref<128x64xbf16, #tpu.memory_space<vmem>>, %arg6: memref<1x64xf32, #tpu.memory_space<vmem>>, %arg7: memref<2x64xbf16, #tpu.memory_space<vmem>>, %arg8: memref<2x1xf32, #tpu.memory_space<vmem>>, %arg9: memref<2x512xf32, #tpu.memory_space<vmem>>) attributes {dimension_semantics = [#tpu.dimension_semantics<parallel>], iteration_bounds = array<i64: 2>, scalar_prefetch = 0 : i64, scratch_operands = 0 : i64, tpu.core_type = #tpu.core_type<tc>, window_params = [{transform_indices = @transform_0, window_bounds = array<i64: 512, 31>}, {transform_indices = @transform_1, window_bounds = array<i64: 2, 512>}, {pipeline_mode = #tpu.pipeline_mode<synchronous>, transform_indices = @transform_2, window_bounds = array<i64: 31, 128>}, {pipeline_mode = #tpu.pipeline_mode<synchronous>, transform_indices = @transform_3, window_bounds = array<i64: 1, 128>}, {pipeline_mode = #tpu.pipeline_mode<synchronous>, transform_indices = @transform_4, window_bounds = array<i64: 128, 64>}, {pipeline_mode = #tpu.pipeline_mode<synchronous>, transform_indices = @transform_5, window_bounds = array<i64: 1, 64>}, {pipeline_mode = #tpu.pipeline_mode<synchronous>, transform_indices = @transform_6, window_bounds = array<i64: 2, 64>}, {pipeline_mode = #tpu.pipeline_mode<synchronous>, transform_indices = @transform_7, window_bounds = array<i64: 2, 1>}, {transform_indices = @transform_8, window_bounds = array<i64: 2, 512>}]} {
    %c0 = arith.constant 0 : index
    %c0_0 = arith.constant 0 : index
    %0 = vector.load %arg1[%c0, %c0_0] : memref<512x31xbf16, #tpu.memory_space<vmem>>, vector<512x31xbf16>
    %c0_1 = arith.constant 0 : index
    %c0_2 = arith.constant 0 : index
    %1 = vector.load %arg3[%c0_1, %c0_2] : memref<31x128xbf16, #tpu.memory_space<vmem>>, vector<31x128xbf16>
    %cst = arith.constant dense<0.000000e+00> : vector<512x128xf32>
    %2 = tpu.matmul %0, %1, %cst {dimension_numbers = #tpu.dot_dimension_numbers<[1], [0], [0], [1], [0, 0, 1, 1], [], []>} : vector<512x31xbf16>, vector<31x128xbf16>, vector<512x128xf32> -> vector<512x128xf32>
    %c0_3 = arith.constant 0 : index
    %c0_4 = arith.constant 0 : index
    %3 = vector.load %arg4[%c0_3, %c0_4] : memref<1x128xf32, #tpu.memory_space<vmem>>, vector<1x128xf32>
    %4 = vector.broadcast %3 : vector<1x128xf32> to vector<512x128xf32>
    %5 = arith.addf %2, %4 : vector<512x128xf32>
    %cst_5 = arith.constant 0.000000e+00 : f32
    %6 = vector.broadcast %cst_5 : f32 to vector<512x128xf32>
    %7 = arith.maximumf %5, %6 : vector<512x128xf32>
    %8 = arith.truncf %7 : vector<512x128xf32> to vector<512x128xbf16>
    %c0_6 = arith.constant 0 : index
    %c0_7 = arith.constant 0 : index
    %9 = vector.load %arg5[%c0_6, %c0_7] : memref<128x64xbf16, #tpu.memory_space<vmem>>, vector<128x64xbf16>
    %cst_8 = arith.constant dense<0.000000e+00> : vector<512x64xf32>
    %10 = tpu.matmul %8, %9, %cst_8 {dimension_numbers = #tpu.dot_dimension_numbers<[1], [0], [0], [1], [0, 0, 1, 1], [], []>} : vector<512x128xbf16>, vector<128x64xbf16>, vector<512x64xf32> -> vector<512x64xf32>
    %c0_9 = arith.constant 0 : index
    %c0_10 = arith.constant 0 : index
    %11 = vector.load %arg6[%c0_9, %c0_10] : memref<1x64xf32, #tpu.memory_space<vmem>>, vector<1x64xf32>
    %12 = vector.broadcast %11 : vector<1x64xf32> to vector<512x64xf32>
    %13 = arith.addf %10, %12 : vector<512x64xf32>
    %cst_11 = arith.constant 0.000000e+00 : f32
    %14 = vector.broadcast %cst_11 : f32 to vector<512x64xf32>
    %15 = arith.maximumf %13, %14 : vector<512x64xf32>
    %c0_12 = arith.constant 0 : index
    %c0_13 = arith.constant 0 : index
    %16 = vector.load %arg7[%c0_12, %c0_13] : memref<2x64xbf16, #tpu.memory_space<vmem>>, vector<2x64xbf16>
    %17 = arith.truncf %15 : vector<512x64xf32> to vector<512x64xbf16>
    %cst_14 = arith.constant dense<0.000000e+00> : vector<2x512xf32>
    %18 = tpu.matmul %16, %17, %cst_14 {dimension_numbers = #tpu.dot_dimension_numbers<[1], [1], [0], [0], [0, 0, 1, 0], [], []>} : vector<2x64xbf16>, vector<512x64xbf16>, vector<2x512xf32> -> vector<2x512xf32>
    %c0_15 = arith.constant 0 : index
    %c0_16 = arith.constant 0 : index
    %19 = vector.load %arg2[%c0_15, %c0_16] : memref<2x512xf32, #tpu.memory_space<vmem>>, vector<2x512xf32>
    %20 = arith.addf %19, %18 : vector<2x512xf32>
    %c0_17 = arith.constant 0 : index
    %c0_18 = arith.constant 0 : index
    %21 = vector.load %arg8[%c0_17, %c0_18] : memref<2x1xf32, #tpu.memory_space<vmem>>, vector<2x1xf32>
    %22 = vector.broadcast %21 : vector<2x1xf32> to vector<2x512xf32>
    %23 = arith.addf %20, %22 : vector<2x512xf32>
    %c0_19 = arith.constant 0 : index
    %c0_20 = arith.constant 0 : index
    %24 = vector.load %arg9[%c0_19, %c0_20] : memref<2x512xf32, #tpu.memory_space<vmem>>, vector<2x512xf32>
    tpu.vector_store %arg9[%c0_19, %c0_20], %23 {strides = array<i32>} : memref<2x512xf32, #tpu.memory_space<vmem>>, vector<2x512xf32>,
    return
  }
  func.func @transform_0(%arg0: i32) -> (i32, i32) {
    %c0_i32 = arith.constant 0 : i32
    %c0_i32_0 = arith.constant 0 : i32
    return %arg0, %c0_i32 : i32, i32
  }
  func.func @transform_1(%arg0: i32) -> (i32, i32) {
    %c0_i32 = arith.constant 0 : i32
    %c0_i32_0 = arith.constant 0 : i32
    return %c0_i32, %arg0 : i32, i32
  }
  func.func @transform_2(%arg0: i32) -> (i32, i32) {
    %c0_i32 = arith.constant 0 : i32
    %c0_i32_0 = arith.constant 0 : i32
    %c0_i32_1 = arith.constant 0 : i32
    return %c0_i32, %c0_i32_0 : i32, i32
  }
  func.func @transform_3(%arg0: i32) -> (i32, i32) {
    %c0_i32 = arith.constant 0 : i32
    %c0_i32_0 = arith.constant 0 : i32
    %c0_i32_1 = arith.constant 0 : i32
    return %c0_i32, %c0_i32_0 : i32, i32
  }
  func.func @transform_4(%arg0: i32) -> (i32, i32) {
    %c0_i32 = arith.constant 0 : i32
    %c0_i32_0 = arith.constant 0 : i32
    %c0_i32_1 = arith.constant 0 : i32
    return %c0_i32, %c0_i32_0 : i32, i32
  }
  func.func @transform_5(%arg0: i32) -> (i32, i32) {
    %c0_i32 = arith.constant 0 : i32
    %c0_i32_0 = arith.constant 0 : i32
    %c0_i32_1 = arith.constant 0 : i32
    return %c0_i32, %c0_i32_0 : i32, i32
  }
  func.func @transform_6(%arg0: i32) -> (i32, i32) {
    %c0_i32 = arith.constant 0 : i32
    %c0_i32_0 = arith.constant 0 : i32
    %c0_i32_1 = arith.constant 0 : i32
    return %c0_i32, %c0_i32_0 : i32, i32
  }
  func.func @transform_7(%arg0: i32) -> (i32, i32) {
    %c0_i32 = arith.constant 0 : i32
    %c0_i32_0 = arith.constant 0 : i32
    %c0_i32_1 = arith.constant 0 : i32
    return %c0_i32, %c0_i32_0 : i32, i32
  }
  func.func @transform_8(%arg0: i32) -> (i32, i32) {
    %c0_i32 = arith.constant 0 : i32
    %c0_i32_0 = arith.constant 0 : i32
    return %c0_i32, %arg0 : i32, i32
  }
}

</mosaic_0001>

<llo_original>
// kernel: a_call__.1
$region0: #{a_call__.1}
  #allocation0 [shape = 'u32[]', space=smem, size = 0x4, offset = 0x4, fixed_abs, tag = 'smem constant byte address 0x4 - core index']
  #allocation1 [shape = 'u32[144,128]{1,0:T(1,128)}', space=vmem, size = 0x12000, scoped, tag = 'internal scratch']
  %s0 = inlined_call_operand.vmem [shape: bf16[1024,31], index: 0, kind: input, shape index: {}]
  %s1 = inlined_call_operand.vmem [shape: f32[2,1024], index: 1, kind: input, shape index: {}, may-alias: {1,8}]
  %s2 = inlined_call_operand.vmem [shape: bf16[31,128], index: 2, kind: input, shape index: {}]
  %s3 = inlined_call_operand.vmem [shape: f32[1,128], index: 3, kind: input, shape index: {}]
  %s4 = inlined_call_operand.vmem [shape: bf16[128,64], index: 4, kind: input, shape index: {}]
  %s5 = inlined_call_operand.vmem [shape: f32[1,64], index: 5, kind: input, shape index: {}]
  %s6 = inlined_call_operand.vmem [shape: bf16[2,64], index: 6, kind: input, shape index: {}]
  %s7 = inlined_call_operand.vmem [shape: f32[2,1], index: 7, kind: input, shape index: {}]
  %s8 = inlined_call_operand.vmem [shape: f32[2,1024], index: 8, kind: output, shape index: {}, may-alias: {1,8}]
  %s9 = sld [smem:[#allocation0]]
  $region65: #{a_call__.1} parent=0
    _
  %s11 = ssub.s32 1, %s9
  %s12 = scalar_select 0, %s11, %s9
  loop: start=0, step=1, limit=4
  $region2: #{a_call__.1} parent=0 // loop_pre_header
    _
  $region3: #{a_call__.1} parent=0 // loop_header
    %s14 = sphi 0, %s18
    %p15 = scmp.ge.s32.totalorder %s14, 4
    %s24 = sphi 0, %s26
    %s27 = sphi 0, %s24
    %s28 = sphi 0, %s27
    %s44 = sphi 0, %s28
    %s50 = sphi 0, %s52
    %s53 = sphi 0, %s50
    %s54 = sphi 0, %s53
    %s70 = sphi 0, %s54
    %s74 = sphi 0, %s74
    %s76 = sphi 0, %s74
    %s77 = sphi 0, %s76
    %s91 = sphi 0, %s77
    %s95 = sphi 0, %s95
    %s97 = sphi 0, %s95
    %s98 = sphi 0, %s97
    %s112 = sphi 0, %s98
    %s116 = sphi 0, %s116
    %s118 = sphi 0, %s116
    %s119 = sphi 0, %s118
    %s133 = sphi 0, %s119
    %s137 = sphi 0, %s137
    %s139 = sphi 0, %s137
    %s140 = sphi 0, %s139
    %s154 = sphi 0, %s140
    %s158 = sphi 0, %s158
    %s160 = sphi 0, %s158
    %s161 = sphi 0, %s160
    %s175 = sphi 0, %s161
    %s179 = sphi 0, %s179
    %s181 = sphi 0, %s179
    %s182 = sphi 0, %s181
    %s196 = sphi 0, %s182
    %s202 = sphi 0, %s204
    %s205 = sphi 0, %s202
    %s206 = sphi 0, %s205
    %s222 = sphi 0, %s206
  $region4: #{a_call__.1} parent=0 // loop_header_branch
    %17 = sbr.rel (%p15) target = $region8
  $region5: #{a_call__.1} parent=0 // loop_body
    %s19 = ssub.s32 %s14, 1
    %s20 = ssub.s32 %s14, 2
    %s21 = sadd.s32 %s14, 1
    %s22 = ssub.s32 %s14, %s21
    %p23 = scmp.eq.s32.totalorder %s22, 0
    %s25 = sadd.s32 %s24, 1
    %s26 = scalar_select %p23, %s24, %s25
    %p29 = pneg %p23
    %p30 = scmp.eq.s32.totalorder %s14, 1
    %p31 = por %p29, %p30
    %p32 = scmp.ne.s32.totalorder %s24, %s27
    %p33 = scmp.eq.s32.totalorder %s14, 0
    %p34 = por %p32, %p33
    %p35 = scmp.ne.s32.totalorder %s24, %s27
    %p36 = scmp.eq.s32.totalorder %s19, 1
    %p37 = por %p35, %p36
    %p38 = scmp.ne.s32.totalorder %s27, %s28
    %p39 = scmp.eq.s32.totalorder %s19, 0
    %p40 = por %p38, %p39
    %p41 = scmp.ne.s32.totalorder %s27, %s28
    %p42 = scmp.eq.s32.totalorder %s20, 1
    %p43 = por %p41, %p42
    %p45 = scmp.ne.s32.totalorder %s28, %s44
    %p46 = scmp.eq.s32.totalorder %s20, 0
    %p47 = por %p45, %p46
    %s48 = ssub.s32 %s14, %s21
    %p49 = scmp.eq.s32.totalorder %s48, 0
    %s51 = sadd.s32 %s50, 1
    %s52 = scalar_select %p49, %s50, %s51
    %p55 = pneg %p49
    %p56 = scmp.eq.s32.totalorder %s14, 1
    %p57 = por %p55, %p56
    %p58 = scmp.ne.s32.totalorder %s50, %s53
    %p59 = scmp.eq.s32.totalorder %s14, 0
    %p60 = por %p58, %p59
    %p61 = scmp.ne.s32.totalorder %s50, %s53
    %p62 = scmp.eq.s32.totalorder %s19, 1
    %p63 = por %p61, %p62
    %p64 = scmp.ne.s32.totalorder %s53, %s54
    %p65 = scmp.eq.s32.totalorder %s19, 0
    %p66 = por %p64, %p65
    %p67 = scmp.ne.s32.totalorder %s53, %s54
    %p68 = scmp.eq.s32.totalorder %s20, 1
    %p69 = por %p67, %p68
    %p71 = scmp.ne.s32.totalorder %s54, %s70
    %p72 = scmp.eq.s32.totalorder %s20, 0
    %p73 = por %p71, %p72
    %s75 = sadd.s32 %s74, 1
    %p78 = scmp.eq.s32.totalorder %s14, 1
    %p79 = scmp.ne.s32.totalorder %s74, %s76
    %p80 = scmp.eq.s32.totalorder %s14, 0
    %p81 = por %p79, %p80
    %p82 = scmp.ne.s32.totalorder %s74, %s76
    %p83 = scmp.eq.s32.totalorder %s19, 1
    %p84 = por %p82, %p83
    %p85 = scmp.ne.s32.totalorder %s76, %s77
    %p86 = scmp.eq.s32.totalorder %s19, 0
    %p87 = por %p85, %p86
    %p88 = scmp.ne.s32.totalorder %s76, %s77
    %p89 = scmp.eq.s32.totalorder %s20, 1
    %p90 = por %p88, %p89
    %p92 = scmp.ne.s32.totalorder %s77, %s91
    %p93 = scmp.eq.s32.totalorder %s20, 0
    %p94 = por %p92, %p93
    %s96 = sadd.s32 %s95, 1
    %p99 = scmp.eq.s32.totalorder %s14, 1
    %p100 = scmp.ne.s32.totalorder %s95, %s97
    %p101 = scmp.eq.s32.totalorder %s14, 0
    %p102 = por %p100, %p101
    %p103 = scmp.ne.s32.totalorder %s95, %s97
    %p104 = scmp.eq.s32.totalorder %s19, 1
    %p105 = por %p103, %p104
    %p106 = scmp.ne.s32.totalorder %s97, %s98
    %p107 = scmp.eq.s32.totalorder %s19, 0
    %p108 = por %p106, %p107
    %p109 = scmp.ne.s32.totalorder %s97, %s98
    %p110 = scmp.eq.s32.totalorder %s20, 1
    %p111 = por %p109, %p110
    %p113 = scmp.ne.s32.totalorder %s98, %s112
    %p114 = scmp.eq.s32.totalorder %s20, 0
    %p115 = por %p113, %p114
    %s117 = sadd.s32 %s116, 1
    %p120 = scmp.eq.s32.totalorder %s14, 1
    %p121 = scmp.ne.s32.totalorder %s116, %s118
    %p122 = scmp.eq.s32.totalorder %s14, 0
    %p123 = por %p121, %p122
    %p124 = scmp.ne.s32.totalorder %s116, %s118
    %p125 = scmp.eq.s32.totalorder %s19, 1
    %p126 = por %p124, %p125
    %p127 = scmp.ne.s32.totalorder %s118, %s119
    %p128 = scmp.eq.s32.totalorder %s19, 0
    %p129 = por %p127, %p128
    %p130 = scmp.ne.s32.totalorder %s118, %s119
    %p131 = scmp.eq.s32.totalorder %s20, 1
    %p132 = por %p130, %p131
    %p134 = scmp.ne.s32.totalorder %s119, %s133
    %p135 = scmp.eq.s32.totalorder %s20, 0
    %p136 = por %p134, %p135
    %s138 = sadd.s32 %s137, 1
    %p141 = scmp.eq.s32.totalorder %s14, 1
    %p142 = scmp.ne.s32.totalorder %s137, %s139
    %p143 = scmp.eq.s32.totalorder %s14, 0
    %p144 = por %p142, %p143
    %p145 = scmp.ne.s32.totalorder %s137, %s139
    %p146 = scmp.eq.s32.totalorder %s19, 1
    %p147 = por %p145, %p146
    %p148 = scmp.ne.s32.totalorder %s139, %s140
    %p149 = scmp.eq.s32.totalorder %s19, 0
    %p150 = por %p148, %p149
    %p151 = scmp.ne.s32.totalorder %s139, %s140
    %p152 = scmp.eq.s32.totalorder %s20, 1
    %p153 = por %p151, %p152
    %p155 = scmp.ne.s32.totalorder %s140, %s154
    %p156 = scmp.eq.s32.totalorder %s20, 0
    %p157 = por %p155, %p156
    %s159 = sadd.s32 %s158, 1
    %p162 = scmp.eq.s32.totalorder %s14, 1
    %p163 = scmp.ne.s32.totalorder %s158, %s160
    %p164 = scmp.eq.s32.totalorder %s14, 0
    %p165 = por %p163, %p164
    %p166 = scmp.ne.s32.totalorder %s158, %s160
    %p167 = scmp.eq.s32.totalorder %s19, 1
    %p168 = por %p166, %p167
    %p169 = scmp.ne.s32.totalorder %s160, %s161
    %p170 = scmp.eq.s32.totalorder %s19, 0
    %p171 = por %p169, %p170
    %p172 = scmp.ne.s32.totalorder %s160, %s161
    %p173 = scmp.eq.s32.totalorder %s20, 1
    %p174 = por %p172, %p173
    %p176 = scmp.ne.s32.totalorder %s161, %s175
    %p177 = scmp.eq.s32.totalorder %s20, 0
    %p178 = por %p176, %p177
    %s180 = sadd.s32 %s179, 1
    %p183 = scmp.eq.s32.totalorder %s14, 1
    %p184 = scmp.ne.s32.totalorder %s179, %s181
    %p185 = scmp.eq.s32.totalorder %s14, 0
    %p186 = por %p184, %p185
    %p187 = scmp.ne.s32.totalorder %s179, %s181
    %p188 = scmp.eq.s32.totalorder %s19, 1
    %p189 = por %p187, %p188
    %p190 = scmp.ne.s32.totalorder %s181, %s182
    %p191 = scmp.eq.s32.totalorder %s19, 0
    %p192 = por %p190, %p191
    %p193 = scmp.ne.s32.totalorder %s181, %s182
    %p194 = scmp.eq.s32.totalorder %s20, 1
    %p195 = por %p193, %p194
    %p197 = scmp.ne.s32.totalorder %s182, %s196
    %p198 = scmp.eq.s32.totalorder %s20, 0
    %p199 = por %p197, %p198
    %s200 = ssub.s32 %s14, %s21
    %p201 = scmp.eq.s32.totalorder %s200, 0
    %s203 = sadd.s32 %s202, 1
    %s204 = scalar_select %p201, %s202, %s203
    %p207 = pneg %p201
    %p208 = scmp.eq.s32.totalorder %s14, 1
    %p209 = por %p207, %p208
    %p210 = scmp.ne.s32.totalorder %s202, %s205
    %p211 = scmp.eq.s32.totalorder %s14, 0
    %p212 = por %p210, %p211
    %p213 = scmp.ne.s32.totalorder %s202, %s205
    %p214 = scmp.eq.s32.totalorder %s19, 1
    %p215 = por %p213, %p214
    %p216 = scmp.ne.s32.totalorder %s205, %s206
    %p217 = scmp.eq.s32.totalorder %s19, 0
    %p218 = por %p216, %p217
    %p219 = scmp.ne.s32.totalorder %s205, %s206
    %p220 = scmp.eq.s32.totalorder %s20, 1
    %p221 = por %p219, %p220
    %p223 = scmp.ne.s32.totalorder %s206, %s222
    %p224 = scmp.eq.s32.totalorder %s20, 0
    %p225 = por %p223, %p224
    %p226 = scmp.le.s32.totalorder 1, %s14
    %p227 = scmp.lt.s32.totalorder %s14, 3
    %p228 = pnand %p226, %p227
    %p229 = pneg %p228
    // Predicated region
    $region9: #{a_call__.1} parent=5 // pred_check
      _
    $region10: #{a_call__.1} parent=5 // pred_check_branch
      %231 = sbr.rel (%p228) target = $region12
    $region11: #{a_call__.1} parent=5 // pred_region
      %s232 = ssub.s32 %s14, 1
      // Predicated region
      $region13: #{a_call__.1} parent=11 // pred_check
        %p233 = pneg %p87
      $region14: #{a_call__.1} parent=11 // pred_check_branch
        %235 = sbr.rel (%p233) target = $region16
      $region15: #{a_call__.1} parent=11 // pred_region
        _
      $region16: #{a_call__.1} parent=11 // pred_fallthru
        _
      // Predicated region
      $region17: #{a_call__.1} parent=11 // pred_check
        %p236 = pneg %p108
      $region18: #{a_call__.1} parent=11 // pred_check_branch
        %238 = sbr.rel (%p236) target = $region20
      $region19: #{a_call__.1} parent=11 // pred_region
        _
      $region20: #{a_call__.1} parent=11 // pred_fallthru
        _
      // Predicated region
      $region21: #{a_call__.1} parent=11 // pred_check
        %p239 = pneg %p129
      $region22: #{a_call__.1} parent=11 // pred_check_branch
        %241 = sbr.rel (%p239) target = $region24
      $region23: #{a_call__.1} parent=11 // pred_region
        _
      $region24: #{a_call__.1} parent=11 // pred_fallthru
        _
      // Predicated region
      $region25: #{a_call__.1} parent=11 // pred_check
        %p242 = pneg %p150
      $region26: #{a_call__.1} parent=11 // pred_check_branch
        %244 = sbr.rel (%p242) target = $region28
      $region27: #{a_call__.1} parent=11 // pred_region
        _
      $region28: #{a_call__.1} parent=11 // pred_fallthru
        _
      // Predicated region
      $region29: #{a_call__.1} parent=11 // pred_check
        %p245 = pneg %p171
      $region30: #{a_call__.1} parent=11 // pred_check_branch
        %247 = sbr.rel (%p245) target = $region32
      $region31: #{a_call__.1} parent=11 // pred_region
        _
      $region32: #{a_call__.1} parent=11 // pred_fallthru
        _
      // Predicated region
      $region33: #{a_call__.1} parent=11 // pred_check
        %p248 = pneg %p192
      $region34: #{a_call__.1} parent=11 // pred_check_branch
        %250 = sbr.rel (%p248) target = $region36
      $region35: #{a_call__.1} parent=11 // pred_region
        _
      $region36: #{a_call__.1} parent=11 // pred_fallthru
        _
    $region12: #{a_call__.1} parent=5 // pred_fallthru
      _
    %p251 = scmp.lt.s32.totalorder %s14, 2
    // Predicated region
    $region37: #{a_call__.1} parent=5 // pred_check
      %p252 = pneg %p251
    $region38: #{a_call__.1} parent=5 // pred_check_branch
      %254 = sbr.rel (%p252) target = $region40
    $region39: #{a_call__.1} parent=5 // pred_region
      // Predicated region
      $region41: #{a_call__.1} parent=39 // pred_check
        %p255 = pneg %p34
      $region42: #{a_call__.1} parent=39 // pred_check_branch
        %257 = sbr.rel (%p255) target = $region44
      $region43: #{a_call__.1} parent=39 // pred_region
        %s258 = smul.u32 64, %s14
        %p259 = scmp.lt.s32.totalorder %s258, 127
        %s260 = scalar_select %p259, %s258, 127
        %s261 = smul.addr %s260, 4
        %s262 = scalar_lea.vmem %s0, %s261
        %s263 = smul.u32 64, %s14
      $region44: #{a_call__.1} parent=39 // pred_fallthru
        _
      // Predicated region
      $region45: #{a_call__.1} parent=39 // pred_check
        %p264 = pneg %p60
      $region46: #{a_call__.1} parent=39 // pred_check_branch
        %266 = sbr.rel (%p264) target = $region48
      $region47: #{a_call__.1} parent=39 // pred_region
        %s267 = smul.u32 4, %s14
        %p268 = scmp.lt.s32.totalorder %s267, 7
        %s269 = scalar_select %p268, %s267, 7
        %s270 = smul.addr %s269, 2
        %s271 = scalar_lea.vmem %s1, %s270
        %s272 = smul.u32 4, %s14
      $region48: #{a_call__.1} parent=39 // pred_fallthru
        _
    $region40: #{a_call__.1} parent=5 // pred_fallthru
      _
    %p273 = scmp.le.s32.totalorder 1, %s14
    %p274 = scmp.lt.s32.totalorder %s14, 3
    %p275 = pnand %p273, %p274
    %p276 = pneg %p275
    // Predicated region
    $region49: #{a_call__.1} parent=5 // pred_check
      _
    $region50: #{a_call__.1} parent=5 // pred_check_branch
      %278 = sbr.rel (%p275) target = $region52
    $region51: #{a_call__.1} parent=5 // pred_region
      %s279 = ssub.s32 %s14, 1
      %s280 = smul.u32 64, %s19
      %p281 = scmp.lt.s32.totalorder %s280, 127
      %s282 = scalar_select %p281, %s280, 127
      %s283 = smul.addr %s282, 4
      %s284 = scalar_lea.vmem %s0, %s283
      %p285 = pneg %p40
      %p286 = pneg %p37
      %s287 = smul.u32 4, %s19
      %p288 = scmp.lt.s32.totalorder %s287, 7
      %s289 = scalar_select %p288, %s287, 7
      %s290 = smul.addr %s289, 2
      %s291 = scalar_lea.vmem %s1, %s290
      %p292 = pneg %p66
      %p293 = pneg %p63
      %p294 = pneg %p87
      %p295 = pneg %p84
      %p296 = pneg %p108
      %p297 = pneg %p105
      %p298 = pneg %p129
      %p299 = pneg %p126
      %p300 = pneg %p150
      %p301 = pneg %p147
      %p302 = pneg %p171
      %p303 = pneg %p168
      %p304 = pneg %p192
      %p305 = pneg %p189
      %p306 = pneg %p218
      %p307 = pneg %p215
      %s308 = smul.u32 4, %s19
      %p309 = scmp.lt.s32.totalorder %s308, 7
      %s310 = scalar_select %p309, %s308, 7
      %s311 = smul.addr %s310, 2
      %s312 = scalar_lea.vmem %s8, %s311
      %s313 = smul.u32 64, %s19
      %p314 = scmp.lt.s32.totalorder %s313, 127
      %s315 = scalar_select %p314, %s313, 127
      %s316 = smul.addr %s315, 4
      %s317 = scalar_lea.vmem %s0, %s316
      %s318 = smul.u32 64, %s19
      %s319 = smul.u32 4, %s19
      %p320 = scmp.lt.s32.totalorder %s319, 7
      %s321 = scalar_select %p320, %s319, 7
      %s322 = smul.addr %s321, 2
      %s323 = scalar_lea.vmem %s1, %s322
      %s324 = smul.u32 4, %s19
      %s325 = smul.u32 4, %s19
      %p326 = scmp.lt.s32.totalorder %s325, 7
      %s327 = scalar_select %p326, %s325, 7
      %s328 = smul.addr %s327, 2
      %s329 = scalar_lea.vmem %s8, %s328
      %s330 = smul.u32 4, %s19
      %v332 = vld [vmem:[%s317] sm:$0xf]
      %v333 = vld [vmem:[%s317 + $0x4] sm:$0xf]
      %v334 = vld [vmem:[%s317 + $0x8] sm:$0xf]
      %v335 = vld [vmem:[%s317 + $0xc] sm:$0xf]
      %v336 = vld [vmem:[%s317 + $0x10] sm:$0xf]
      %v337 = vld [vmem:[%s317 + $0x14] sm:$0xf]
      %v338 = vld [vmem:[%s317 + $0x18] sm:$0xf]
      %v339 = vld [vmem:[%s317 + $0x1c] sm:$0xf]
      %v340 = vld [vmem:[%s317 + $0x20] sm:$0xf]
      %v341 = vld [vmem:[%s317 + $0x24] sm:$0xf]
      %v342 = vld [vmem:[%s317 + $0x28] sm:$0xf]
      %v343 = vld [vmem:[%s317 + $0x2c] sm:$0xf]
      %v344 = vld [vmem:[%s317 + $0x30] sm:$0xf]
      %v345 = vld [vmem:[%s317 + $0x34] sm:$0xf]
      %v346 = vld [vmem:[%s317 + $0x38] sm:$0xf]
      %v347 = vld [vmem:[%s317 + $0x3c] sm:$0xf]
      %v348 = vld [vmem:[%s317 + $0x40] sm:$0xf]
      %v349 = vld [vmem:[%s317 + $0x44] sm:$0xf]
      %v350 = vld [vmem:[%s317 + $0x48] sm:$0xf]
      %v351 = vld [vmem:[%s317 + $0x4c] sm:$0xf]
      %v352 = vld [vmem:[%s317 + $0x50] sm:$0xf]
      %v353 = vld [vmem:[%s317 + $0x54] sm:$0xf]
      %v354 = vld [vmem:[%s317 + $0x58] sm:$0xf]
      %v355 = vld [vmem:[%s317 + $0x5c] sm:$0xf]
      %v356 = vld [vmem:[%s317 + $0x60] sm:$0xf]
      %v357 = vld [vmem:[%s317 + $0x64] sm:$0xf]
      %v358 = vld [vmem:[%s317 + $0x68] sm:$0xf]
      %v359 = vld [vmem:[%s317 + $0x6c] sm:$0xf]
      %v360 = vld [vmem:[%s317 + $0x70] sm:$0xf]
      %v361 = vld [vmem:[%s317 + $0x74] sm:$0xf]
      %v362 = vld [vmem:[%s317 + $0x78] sm:$0xf]
      %v363 = vld [vmem:[%s317 + $0x7c] sm:$0xf]
      %v364 = vld [vmem:[%s317 + $0x80] sm:$0xf]
      %v365 = vld [vmem:[%s317 + $0x84] sm:$0xf]
      %v366 = vld [vmem:[%s317 + $0x88] sm:$0xf]
      %v367 = vld [vmem:[%s317 + $0x8c] sm:$0xf]
      %v368 = vld [vmem:[%s317 + $0x90] sm:$0xf]
      %v369 = vld [vmem:[%s317 + $0x94] sm:$0xf]
      %v370 = vld [vmem:[%s317 + $0x98] sm:$0xf]
      %v371 = vld [vmem:[%s317 + $0x9c] sm:$0xf]
      %v372 = vld [vmem:[%s317 + $0xa0] sm:$0xf]
      %v373 = vld [vmem:[%s317 + $0xa4] sm:$0xf]
      %v374 = vld [vmem:[%s317 + $0xa8] sm:$0xf]
      %v375 = vld [vmem:[%s317 + $0xac] sm:$0xf]
      %v376 = vld [vmem:[%s317 + $0xb0] sm:$0xf]
      %v377 = vld [vmem:[%s317 + $0xb4] sm:$0xf]
      %v378 = vld [vmem:[%s317 + $0xb8] sm:$0xf]
      %v379 = vld [vmem:[%s317 + $0xbc] sm:$0xf]
      %v380 = vld [vmem:[%s317 + $0xc0] sm:$0xf]
      %v381 = vld [vmem:[%s317 + $0xc4] sm:$0xf]
      %v382 = vld [vmem:[%s317 + $0xc8] sm:$0xf]
      %v383 = vld [vmem:[%s317 + $0xcc] sm:$0xf]
      %v384 = vld [vmem:[%s317 + $0xd0] sm:$0xf]
      %v385 = vld [vmem:[%s317 + $0xd4] sm:$0xf]
      %v386 = vld [vmem:[%s317 + $0xd8] sm:$0xf]
      %v387 = vld [vmem:[%s317 + $0xdc] sm:$0xf]
      %v388 = vld [vmem:[%s317 + $0xe0] sm:$0xf]
      %v389 = vld [vmem:[%s317 + $0xe4] sm:$0xf]
      %v390 = vld [vmem:[%s317 + $0xe8] sm:$0xf]
      %v391 = vld [vmem:[%s317 + $0xec] sm:$0xf]
      %v392 = vld [vmem:[%s317 + $0xf0] sm:$0xf]
      %v393 = vld [vmem:[%s317 + $0xf4] sm:$0xf]
      %v394 = vld [vmem:[%s317 + $0xf8] sm:$0xf]
      %v395 = vld [vmem:[%s317 + $0xfc] sm:$0xf]
      %v396 = vld [vmem:[%s2] sm:$0xf]
      %v397 = vld [vmem:[%s2 + $0x4] sm:$0xf]
      %v398 = vld [vmem:[%s2 + $0x8] sm:$0xf]
      %v399 = vld [vmem:[%s2 + $0xc] sm:$0xf]
      %v400 = vld [vmem:[%s3] sm:$0x1]
      %v402 = vlaneseq
      %v403 = vshrl.u32 %v402, 7
      %v404 = vsub.s32 0, %v403
      %v405 = vrot.slane %v400, %v404
      %v471 = vunpack.c.l.b16 %v332
      %v472 = vunpack.c.l.b16 %v333
      %v473 = vunpack.c.l.b16 %v334
      %v474 = vunpack.c.l.b16 %v335
      %v475 = vunpack.c.l.b16 %v336
      %v476 = vunpack.c.l.b16 %v337
      %v477 = vunpack.c.l.b16 %v338
      %v478 = vunpack.c.l.b16 %v339
      %v479 = vunpack.c.l.b16 %v340
      %v480 = vunpack.c.l.b16 %v341
      %v481 = vunpack.c.l.b16 %v342
      %v482 = vunpack.c.l.b16 %v343
      %v483 = vunpack.c.l.b16 %v344
      %v484 = vunpack.c.l.b16 %v345
      %v485 = vunpack.c.l.b16 %v346
      %v486 = vunpack.c.l.b16 %v347
      %v487 = vunpack.c.l.b16 %v348
      %v488 = vunpack.c.l.b16 %v349
      %v489 = vunpack.c.l.b16 %v350
      %v490 = vunpack.c.l.b16 %v351
      %v491 = vunpack.c.l.b16 %v352
      %v492 = vunpack.c.l.b16 %v353
      %v493 = vunpack.c.l.b16 %v354
      %v494 = vunpack.c.l.b16 %v355
      %v495 = vunpack.c.l.b16 %v356
      %v496 = vunpack.c.l.b16 %v357
      %v497 = vunpack.c.l.b16 %v358
      %v498 = vunpack.c.l.b16 %v359
      %v499 = vunpack.c.l.b16 %v360
      %v500 = vunpack.c.l.b16 %v361
      %v501 = vunpack.c.l.b16 %v362
      %v502 = vunpack.c.l.b16 %v363
      %v503 = vunpack.c.l.b16 %v364
      %v504 = vunpack.c.l.b16 %v365
      %v505 = vunpack.c.l.b16 %v366
      %v506 = vunpack.c.l.b16 %v367
      %v507 = vunpack.c.l.b16 %v368
      %v508 = vunpack.c.l.b16 %v369
      %v509 = vunpack.c.l.b16 %v370
      %v510 = vunpack.c.l.b16 %v371
      %v511 = vunpack.c.l.b16 %v372
      %v512 = vunpack.c.l.b16 %v373
      %v513 = vunpack.c.l.b16 %v374
      %v514 = vunpack.c.l.b16 %v375
      %v515 = vunpack.c.l.b16 %v376
      %v516 = vunpack.c.l.b16 %v377
      %v517 = vunpack.c.l.b16 %v378
      %v518 = vunpack.c.l.b16 %v379
      %v519 = vunpack.c.l.b16 %v380
      %v520 = vunpack.c.l.b16 %v381
      %v521 = vunpack.c.l.b16 %v382
      %v522 = vunpack.c.l.b16 %v383
      %v523 = vunpack.c.l.b16 %v384
      %v524 = vunpack.c.l.b16 %v385
      %v525 = vunpack.c.l.b16 %v386
      %v526 = vunpack.c.l.b16 %v387
      %v527 = vunpack.c.l.b16 %v388
      %v528 = vunpack.c.l.b16 %v389
      %v529 = vunpack.c.l.b16 %v390
      %v530 = vunpack.c.l.b16 %v391
      %v531 = vunpack.c.l.b16 %v392
      %v532 = vunpack.c.l.b16 %v393
      %v533 = vunpack.c.l.b16 %v394
      %v534 = vunpack.c.l.b16 %v395
      %v535 = vpack.c.b16 %v472, %v471
      %v536 = vpack.c.b16 %v474, %v473
      %v537 = vpack.c.b16 %v476, %v475
      %v538 = vpack.c.b16 %v478, %v477
      %v539 = vpack.c.b16 %v480, %v479
      %v540 = vpack.c.b16 %v482, %v481
      %v541 = vpack.c.b16 %v484, %v483
      %v542 = vpack.c.b16 %v486, %v485
      %v543 = vpack.c.b16 %v488, %v487
      %v544 = vpack.c.b16 %v490, %v489
      %v545 = vpack.c.b16 %v492, %v491
      %v546 = vpack.c.b16 %v494, %v493
      %v547 = vpack.c.b16 %v496, %v495
      %v548 = vpack.c.b16 %v498, %v497
      %v549 = vpack.c.b16 %v500, %v499
      %v550 = vpack.c.b16 %v502, %v501
      %v551 = vpack.c.b16 %v504, %v503
      %v552 = vpack.c.b16 %v506, %v505
      %v553 = vpack.c.b16 %v508, %v507
      %v554 = vpack.c.b16 %v510, %v509
      %v555 = vpack.c.b16 %v512, %v511
      %v556 = vpack.c.b16 %v514, %v513
      %v557 = vpack.c.b16 %v516, %v515
      %v558 = vpack.c.b16 %v518, %v517
      %v559 = vpack.c.b16 %v520, %v519
      %v560 = vpack.c.b16 %v522, %v521
      %v561 = vpack.c.b16 %v524, %v523
      %v562 = vpack.c.b16 %v526, %v525
      %v563 = vpack.c.b16 %v528, %v527
      %v564 = vpack.c.b16 %v530, %v529
      %v565 = vpack.c.b16 %v532, %v531
      %v566 = vpack.c.b16 %v534, %v533
      %v571 = vunpack.c.l.b16 %v396
      %v572 = vunpack.c.l.b16 %v397
      %v573 = vunpack.c.l.b16 %v398
      %v574 = vunpack.c.l.b16 %v399
      %v575 = vpack.c.b16 %v572, %v571
      %v576 = vpack.c.b16 %v574, %v573
      %vm578 = vcmask 252928
      %v580 = vsel %vm578, %v535, 0
      %v583 = vsel %vm578, %v536, 0
      %v586 = vsel %vm578, %v537, 0
      %v589 = vsel %vm578, %v538, 0
      %v592 = vsel %vm578, %v539, 0
      %v595 = vsel %vm578, %v540, 0
      %v598 = vsel %vm578, %v541, 0
      %v601 = vsel %vm578, %v542, 0
      %v604 = vsel %vm578, %v543, 0
      %v607 = vsel %vm578, %v544, 0
      %v610 = vsel %vm578, %v545, 0
      %v613 = vsel %vm578, %v546, 0
      %v616 = vsel %vm578, %v547, 0
      %v619 = vsel %vm578, %v548, 0
      %v622 = vsel %vm578, %v549, 0
      %v625 = vsel %vm578, %v550, 0
      %v628 = vsel %vm578, %v551, 0
      %v631 = vsel %vm578, %v552, 0
      %v634 = vsel %vm578, %v553, 0
      %v637 = vsel %vm578, %v554, 0
      %v640 = vsel %vm578, %v555, 0
      %v643 = vsel %vm578, %v556, 0
      %v646 = vsel %vm578, %v557, 0
      %v649 = vsel %vm578, %v558, 0
      %v652 = vsel %vm578, %v559, 0
      %v655 = vsel %vm578, %v560, 0
      %v658 = vsel %vm578, %v561, 0
      %v661 = vsel %vm578, %v562, 0
      %v664 = vsel %vm578, %v563, 0
      %v667 = vsel %vm578, %v564, 0
      %v670 = vsel %vm578, %v565, 0
      %v673 = vsel %vm578, %v566, 0
      %vm675 = vcmask 1046528
      %vm676 = vcmask 1047552
      %v677 = vsel %vm675, 4294967295, 65535
      %v678 = vsel %vm676, %v677, 0
      %v680 = vand.u32 %v576, %v678
      %682 = vmatprep.subr.bf16.mxu0 0
      %683 = vmatpush1.bf16.msra.mxu0 %v575
      %684 = vmatprep.subr.bf16.mxu0 0
      %685 = vmatpush1.bf16.msra.mxu0 %v680
      %686 = vmatprep.subr.bf16.mxu0 0
      %687 = vmatpush1.bf16.msra.mxu0 0
      %688 = vmatprep.subr.bf16.mxu0 0
      %689 = vmatpush1.bf16.msra.mxu0 0
      %690 = vmatprep.subr.bf16.mxu0 0
      %691 = vmatpush1.bf16.msra.mxu0 0
      %692 = vmatprep.subr.bf16.mxu0 0
      %693 = vmatpush1.bf16.msra.mxu0 0
      %694 = vmatprep.subr.bf16.mxu0 0
      %695 = vmatpush1.bf16.msra.mxu0 0
      %696 = vmatprep.subr.bf16.mxu0 0
      %697 = vmatpush1.bf16.msra.mxu0 0
      %698 = vmatprep.subr.bf16.mxu0 0
      %699 = vmatpush1.bf16.msra.mxu0 0
      %700 = vmatprep.subr.bf16.mxu0 0
      %701 = vmatpush1.bf16.msra.mxu0 0
      %702 = vmatprep.subr.bf16.mxu0 0
      %703 = vmatpush1.bf16.msra.mxu0 0
      %704 = vmatprep.subr.bf16.mxu0 0
      %705 = vmatpush1.bf16.msra.mxu0 0
      %706 = vmatprep.subr.bf16.mxu0 0
      %707 = vmatpush1.bf16.msra.mxu0 0
      %708 = vmatprep.subr.bf16.mxu0 0
      %709 = vmatpush1.bf16.msra.mxu0 0
      %710 = vmatprep.subr.bf16.mxu0 0
      %711 = vmatpush1.bf16.msra.mxu0 0
      %712 = vmatprep.subr.bf16.mxu0 0
      %713 = vmatpush1.bf16.msra.mxu0 0
      %714 = vmatprep.mubr.bf16.mxu0 0
      %715 = vmatmul.mubr.bf16.gmra.mrb[0].mxu0 %v580
      %v716 = vpop.f32.mrb[0].mxu0
      %v717 = vadd.f32 %v405, %v716
      %v718 = vpop.f32.mrb[0].mxu0
      %v719 = vpop.f32.mrb[0].mxu0
      %v720 = vadd.f32 %v405, %v719
      %v721 = vpop.f32.mrb[0].mxu0
      %722 = vmatprep.mubr.bf16.mxu0 0
      %723 = vmatmul.mubr.bf16.gmra.mrb[0].mxu0 %v583
      %v724 = vpop.f32.mrb[0].mxu0
      %v725 = vadd.f32 %v405, %v724
      %v726 = vpop.f32.mrb[0].mxu0
      %v727 = vpop.f32.mrb[0].mxu0
      %v728 = vadd.f32 %v405, %v727
      %v729 = vpop.f32.mrb[0].mxu0
      %730 = vmatprep.mubr.bf16.mxu0 0
      %731 = vmatmul.mubr.bf16.gmra.mrb[0].mxu0 %v586
      %v732 = vpop.f32.mrb[0].mxu0
      %v733 = vadd.f32 %v405, %v732
      %v734 = vpop.f32.mrb[0].mxu0
      %v735 = vpop.f32.mrb[0].mxu0
      %v736 = vadd.f32 %v405, %v735
      %v737 = vpop.f32.mrb[0].mxu0
      %738 = vmatprep.mubr.bf16.mxu0 0
      %739 = vmatmul.mubr.bf16.gmra.mrb[0].mxu0 %v589
      %v740 = vpop.f32.mrb[0].mxu0
      %v741 = vadd.f32 %v405, %v740
      %v742 = vpop.f32.mrb[0].mxu0
      %v743 = vpop.f32.mrb[0].mxu0
      %v744 = vadd.f32 %v405, %v743
      %v745 = vpop.f32.mrb[0].mxu0
      %746 = vmatprep.mubr.bf16.mxu0 0
      %747 = vmatmul.mubr.bf16.gmra.mrb[0].mxu0 %v592
      %v748 = vpop.f32.mrb[0].mxu0
      %v749 = vadd.f32 %v405, %v748
      %v750 = vpop.f32.mrb[0].mxu0
      %v751 = vpop.f32.mrb[0].mxu0
      %v752 = vadd.f32 %v405, %v751
      %v753 = vpop.f32.mrb[0].mxu0
      %754 = vmatprep.mubr.bf16.mxu0 0
      %755 = vmatmul.mubr.bf16.gmra.mrb[0].mxu0 %v595
      %v756 = vpop.f32.mrb[0].mxu0
      %v757 = vadd.f32 %v405, %v756
      %v758 = vpop.f32.mrb[0].mxu0
      %v759 = vpop.f32.mrb[0].mxu0
      %v760 = vadd.f32 %v405, %v759
      %v761 = vpop.f32.mrb[0].mxu0
      %762 = vmatprep.mubr.bf16.mxu0 0
      %763 = vmatmul.mubr.bf16.gmra.mrb[0].mxu0 %v598
      %v764 = vpop.f32.mrb[0].mxu0
      %v765 = vadd.f32 %v405, %v764
      %v766 = vpop.f32.mrb[0].mxu0
      %v767 = vpop.f32.mrb[0].mxu0
      %v768 = vadd.f32 %v405, %v767
      %v769 = vpop.f32.mrb[0].mxu0
      %770 = vmatprep.mubr.bf16.mxu0 0
      %771 = vmatmul.mubr.bf16.gmra.mrb[0].mxu0 %v601
      %v772 = vpop.f32.mrb[0].mxu0
      %v773 = vadd.f32 %v405, %v772
      %v774 = vpop.f32.mrb[0].mxu0
      %v775 = vpop.f32.mrb[0].mxu0
      %v776 = vadd.f32 %v405, %v775
      %v777 = vpop.f32.mrb[0].mxu0
      %778 = vmatprep.mubr.bf16.mxu0 0
      %779 = vmatmul.mubr.bf16.gmra.mrb[0].mxu0 %v604
      %v780 = vpop.f32.mrb[0].mxu0
      %v781 = vadd.f32 %v405, %v780
      %v782 = vpop.f32.mrb[0].mxu0
      %v783 = vpop.f32.mrb[0].mxu0
      %v784 = vadd.f32 %v405, %v783
      %v785 = vpop.f32.mrb[0].mxu0
      %786 = vmatprep.mubr.bf16.mxu0 0
      %787 = vmatmul.mubr.bf16.gmra.mrb[0].mxu0 %v607
      %v788 = vpop.f32.mrb[0].mxu0
      %v789 = vadd.f32 %v405, %v788
      %v790 = vpop.f32.mrb[0].mxu0
      %v791 = vpop.f32.mrb[0].mxu0
      %v792 = vadd.f32 %v405, %v791
      %v793 = vpop.f32.mrb[0].mxu0
      %794 = vmatprep.mubr.bf16.mxu0 0
      %795 = vmatmul.mubr.bf16.gmra.mrb[0].mxu0 %v610
      %v796 = vpop.f32.mrb[0].mxu0
      %v797 = vadd.f32 %v405, %v796
      %v798 = vpop.f32.mrb[0].mxu0
      %v799 = vpop.f32.mrb[0].mxu0
      %v800 = vadd.f32 %v405, %v799
      %v801 = vpop.f32.mrb[0].mxu0
      %802 = vmatprep.mubr.bf16.mxu0 0
      %803 = vmatmul.mubr.bf16.gmra.mrb[0].mxu0 %v613
      %v804 = vpop.f32.mrb[0].mxu0
      %v805 = vadd.f32 %v405, %v804
      %v806 = vpop.f32.mrb[0].mxu0
      %v807 = vpop.f32.mrb[0].mxu0
      %v808 = vadd.f32 %v405, %v807
      %v809 = vpop.f32.mrb[0].mxu0
      %810 = vmatprep.mubr.bf16.mxu0 0
      %811 = vmatmul.mubr.bf16.gmra.mrb[0].mxu0 %v616
      %v812 = vpop.f32.mrb[0].mxu0
      %v813 = vadd.f32 %v405, %v812
      %v814 = vpop.f32.mrb[0].mxu0
      %v815 = vpop.f32.mrb[0].mxu0
      %v816 = vadd.f32 %v405, %v815
      %v817 = vpop.f32.mrb[0].mxu0
      %818 = vmatprep.mubr.bf16.mxu0 0
      %819 = vmatmul.mubr.bf16.gmra.mrb[0].mxu0 %v619
      %v820 = vpop.f32.mrb[0].mxu0
      %v821 = vadd.f32 %v405, %v820
      %v822 = vpop.f32.mrb[0].mxu0
      %v823 = vpop.f32.mrb[0].mxu0
      %v824 = vadd.f32 %v405, %v823
      %v825 = vpop.f32.mrb[0].mxu0
      %826 = vmatprep.mubr.bf16.mxu0 0
      %827 = vmatmul.mubr.bf16.gmra.mrb[0].mxu0 %v622
      %v828 = vpop.f32.mrb[0].mxu0
      %v829 = vadd.f32 %v405, %v828
      %v830 = vpop.f32.mrb[0].mxu0
      %v831 = vpop.f32.mrb[0].mxu0
      %v832 = vadd.f32 %v405, %v831
      %v833 = vpop.f32.mrb[0].mxu0
      %834 = vmatprep.mubr.bf16.mxu0 0
      %835 = vmatmul.mubr.bf16.gmra.mrb[0].mxu0 %v625
      %v836 = vpop.f32.mrb[0].mxu0
      %v837 = vadd.f32 %v405, %v836
      %v838 = vpop.f32.mrb[0].mxu0
      %v839 = vpop.f32.mrb[0].mxu0
      %v840 = vadd.f32 %v405, %v839
      %v841 = vpop.f32.mrb[0].mxu0
      %842 = vmatprep.mubr.bf16.mxu0 0
      %843 = vmatmul.mubr.bf16.gmra.mrb[0].mxu0 %v628
      %v844 = vpop.f32.mrb[0].mxu0
      %v845 = vadd.f32 %v405, %v844
      %v846 = vpop.f32.mrb[0].mxu0
      %v847 = vpop.f32.mrb[0].mxu0
      %v848 = vadd.f32 %v405, %v847
      %v849 = vpop.f32.mrb[0].mxu0
      %850 = vmatprep.mubr.bf16.mxu0 0
      %851 = vmatmul.mubr.bf16.gmra.mrb[0].mxu0 %v631
      %v852 = vpop.f32.mrb[0].mxu0
      %v853 = vadd.f32 %v405, %v852
      %v854 = vpop.f32.mrb[0].mxu0
      %v855 = vpop.f32.mrb[0].mxu0
      %v856 = vadd.f32 %v405, %v855
      %v857 = vpop.f32.mrb[0].mxu0
      %858 = vmatprep.mubr.bf16.mxu0 0
      %859 = vmatmul.mubr.bf16.gmra.mrb[0].mxu0 %v634
      %v860 = vpop.f32.mrb[0].mxu0
      %v861 = vadd.f32 %v405, %v860
      %v862 = vpop.f32.mrb[0].mxu0
      %v863 = vpop.f32.mrb[0].mxu0
      %v864 = vadd.f32 %v405, %v863
      %v865 = vpop.f32.mrb[0].mxu0
      %866 = vmatprep.mubr.bf16.mxu0 0
      %867 = vmatmul.mubr.bf16.gmra.mrb[0].mxu0 %v637
      %v868 = vpop.f32.mrb[0].mxu0
      %v869 = vadd.f32 %v405, %v868
      %v870 = vpop.f32.mrb[0].mxu0
      %v871 = vpop.f32.mrb[0].mxu0
      %v872 = vadd.f32 %v405, %v871
      %v873 = vpop.f32.mrb[0].mxu0
      %874 = vmatprep.mubr.bf16.mxu0 0
      %875 = vmatmul.mubr.bf16.gmra.mrb[0].mxu0 %v640
      %v876 = vpop.f32.mrb[0].mxu0
      %v877 = vadd.f32 %v405, %v876
      %v878 = vpop.f32.mrb[0].mxu0
      %v879 = vpop.f32.mrb[0].mxu0
      %v880 = vadd.f32 %v405, %v879
      %v881 = vpop.f32.mrb[0].mxu0
      %882 = vmatprep.mubr.bf16.mxu0 0
      %883 = vmatmul.mubr.bf16.gmra.mrb[0].mxu0 %v643
      %v884 = vpop.f32.mrb[0].mxu0
      %v885 = vadd.f32 %v405, %v884
      %v886 = vpop.f32.mrb[0].mxu0
      %v887 = vpop.f32.mrb[0].mxu0
      %v888 = vadd.f32 %v405, %v887
      %v889 = vpop.f32.mrb[0].mxu0
      %890 = vmatprep.mubr.bf16.mxu0 0
      %891 = vmatmul.mubr.bf16.gmra.mrb[0].mxu0 %v646
      %v892 = vpop.f32.mrb[0].mxu0
      %v893 = vadd.f32 %v405, %v892
      %v894 = vpop.f32.mrb[0].mxu0
      %v895 = vpop.f32.mrb[0].mxu0
      %v896 = vadd.f32 %v405, %v895
      %v897 = vpop.f32.mrb[0].mxu0
      %898 = vmatprep.mubr.bf16.mxu0 0
      %899 = vmatmul.mubr.bf16.gmra.mrb[0].mxu0 %v649
      %v900 = vpop.f32.mrb[0].mxu0
      %v901 = vadd.f32 %v405, %v900
      %v902 = vpop.f32.mrb[0].mxu0
      %v903 = vpop.f32.mrb[0].mxu0
      %v904 = vadd.f32 %v405, %v903
      %v905 = vpop.f32.mrb[0].mxu0
      %906 = vmatprep.mubr.bf16.mxu0 0
      %907 = vmatmul.mubr.bf16.gmra.mrb[0].mxu0 %v652
      %v908 = vpop.f32.mrb[0].mxu0
      %v909 = vadd.f32 %v405, %v908
      %v910 = vpop.f32.mrb[0].mxu0
      %v911 = vpop.f32.mrb[0].mxu0
      %v912 = vadd.f32 %v405, %v911
      %v913 = vpop.f32.mrb[0].mxu0
      %914 = vmatprep.mubr.bf16.mxu0 0
      %915 = vmatmul.mubr.bf16.gmra.mrb[0].mxu0 %v655
      %v916 = vpop.f32.mrb[0].mxu0
      %v917 = vadd.f32 %v405, %v916
      %v918 = vpop.f32.mrb[0].mxu0
      %v919 = vpop.f32.mrb[0].mxu0
      %v920 = vadd.f32 %v405, %v919
      %v921 = vpop.f32.mrb[0].mxu0
      %922 = vmatprep.mubr.bf16.mxu0 0
      %923 = vmatmul.mubr.bf16.gmra.mrb[0].mxu0 %v658
      %v924 = vpop.f32.mrb[0].mxu0
      %v925 = vadd.f32 %v405, %v924
      %v926 = vpop.f32.mrb[0].mxu0
      %v927 = vpop.f32.mrb[0].mxu0
      %v928 = vadd.f32 %v405, %v927
      %v929 = vpop.f32.mrb[0].mxu0
      %930 = vmatprep.mubr.bf16.mxu0 0
      %931 = vmatmul.mubr.bf16.gmra.mrb[0].mxu0 %v661
      %v932 = vpop.f32.mrb[0].mxu0
      %v933 = vadd.f32 %v405, %v932
      %v934 = vpop.f32.mrb[0].mxu0
      %v935 = vpop.f32.mrb[0].mxu0
      %v936 = vadd.f32 %v405, %v935
      %v937 = vpop.f32.mrb[0].mxu0
      %938 = vmatprep.mubr.bf16.mxu0 0
      %939 = vmatmul.mubr.bf16.gmra.mrb[0].mxu0 %v664
      %v940 = vpop.f32.mrb[0].mxu0
      %v941 = vadd.f32 %v405, %v940
      %v942 = vpop.f32.mrb[0].mxu0
      %v943 = vpop.f32.mrb[0].mxu0
      %v944 = vadd.f32 %v405, %v943
      %v945 = vpop.f32.mrb[0].mxu0
      %946 = vmatprep.mubr.bf16.mxu0 0
      %947 = vmatmul.mubr.bf16.gmra.mrb[0].mxu0 %v667
      %v948 = vpop.f32.mrb[0].mxu0
      %v949 = vadd.f32 %v405, %v948
      %v950 = vpop.f32.mrb[0].mxu0
      %v951 = vpop.f32.mrb[0].mxu0
      %v952 = vadd.f32 %v405, %v951
      %v953 = vpop.f32.mrb[0].mxu0
      %954 = vmatprep.mubr.bf16.mxu0 0
      %955 = vmatmul.mubr.bf16.gmra.mrb[0].mxu0 %v670
      %v956 = vpop.f32.mrb[0].mxu0
      %v957 = vadd.f32 %v405, %v956
      %v958 = vpop.f32.mrb[0].mxu0
      %v959 = vpop.f32.mrb[0].mxu0
      %v960 = vadd.f32 %v405, %v959
      %v961 = vpop.f32.mrb[0].mxu0
      %962 = vmatprep.mubr.bf16.mxu0 0
      %963 = vmatmul.mubr.bf16.gmra.mrb[0].mxu0 %v673
      %v964 = vpop.f32.mrb[0].mxu0
      %v965 = vadd.f32 %v405, %v964
      %v966 = vpop.f32.mrb[0].mxu0
      %v967 = vpop.f32.mrb[0].mxu0
      %v968 = vadd.f32 %v405, %v967
      %v969 = vpop.f32.mrb[0].mxu0
      %970 = vdwg.mxu0
      %v971 = vmax.f32 %v717, 0.0
      %v972 = vmax.f32 %v720, 0.0
      %v973 = vmax.f32 %v725, 0.0
      %v974 = vmax.f32 %v728, 0.0
      %v975 = vmax.f32 %v733, 0.0
      %v976 = vmax.f32 %v736, 0.0
      %v977 = vmax.f32 %v741, 0.0
      %v978 = vmax.f32 %v744, 0.0
      %v979 = vmax.f32 %v749, 0.0
      %v980 = vmax.f32 %v752, 0.0
      %v981 = vmax.f32 %v757, 0.0
      %v982 = vmax.f32 %v760, 0.0
      %v983 = vmax.f32 %v765, 0.0
      %v984 = vmax.f32 %v768, 0.0
      %v985 = vmax.f32 %v773, 0.0
      %v986 = vmax.f32 %v776, 0.0
      %v987 = vmax.f32 %v781, 0.0
      %v988 = vmax.f32 %v784, 0.0
      %v989 = vmax.f32 %v789, 0.0
      %v990 = vmax.f32 %v792, 0.0
      %v991 = vmax.f32 %v797, 0.0
      %v992 = vmax.f32 %v800, 0.0
      %v993 = vmax.f32 %v805, 0.0
      %v994 = vmax.f32 %v808, 0.0
      %v995 = vmax.f32 %v813, 0.0
      %v996 = vmax.f32 %v816, 0.0
      %v997 = vmax.f32 %v821, 0.0
      %v998 = vmax.f32 %v824, 0.0
      %v999 = vmax.f32 %v829, 0.0
      %v1000 = vmax.f32 %v832, 0.0
      %v1001 = vmax.f32 %v837, 0.0
      %v1002 = vmax.f32 %v840, 0.0
      %v1003 = vmax.f32 %v845, 0.0
      %v1004 = vmax.f32 %v848, 0.0
      %v1005 = vmax.f32 %v853, 0.0
      %v1006 = vmax.f32 %v856, 0.0
      %v1007 = vmax.f32 %v861, 0.0
      %v1008 = vmax.f32 %v864, 0.0
      %v1009 = vmax.f32 %v869, 0.0
      %v1010 = vmax.f32 %v872, 0.0
      %v1011 = vmax.f32 %v877, 0.0
      %v1012 = vmax.f32 %v880, 0.0
      %v1013 = vmax.f32 %v885, 0.0
      %v1014 = vmax.f32 %v888, 0.0
      %v1015 = vmax.f32 %v893, 0.0
      %v1016 = vmax.f32 %v896, 0.0
      %v1017 = vmax.f32 %v901, 0.0
      %v1018 = vmax.f32 %v904, 0.0
      %v1019 = vmax.f32 %v909, 0.0
      %v1020 = vmax.f32 %v912, 0.0
      %v1021 = vmax.f32 %v917, 0.0
      %v1022 = vmax.f32 %v920, 0.0
      %v1023 = vmax.f32 %v925, 0.0
      %v1024 = vmax.f32 %v928, 0.0
      %v1025 = vmax.f32 %v933, 0.0
      %v1026 = vmax.f32 %v936, 0.0
      %v1027 = vmax.f32 %v941, 0.0
      %v1028 = vmax.f32 %v944, 0.0
      %v1029 = vmax.f32 %v949, 0.0
      %v1030 = vmax.f32 %v952, 0.0
      %v1031 = vmax.f32 %v957, 0.0
      %v1032 = vmax.f32 %v960, 0.0
      %v1033 = vmax.f32 %v965, 0.0
      %v1034 = vmax.f32 %v968, 0.0
      %v1035 = vpack.c.bf16 %v972, %v971
      %v1036 = vpack.c.bf16 %v974, %v973
      %v1037 = vpack.c.bf16 %v976, %v975
      %v1038 = vpack.c.bf16 %v978, %v977
      %v1039 = vpack.c.bf16 %v980, %v979
      %v1040 = vpack.c.bf16 %v982, %v981
      %v1041 = vpack.c.bf16 %v984, %v983
      %v1042 = vpack.c.bf16 %v986, %v985
      %v1043 = vpack.c.bf16 %v988, %v987
      %v1044 = vpack.c.bf16 %v990, %v989
      %v1045 = vpack.c.bf16 %v992, %v991
      %v1046 = vpack.c.bf16 %v994, %v993
      %v1047 = vpack.c.bf16 %v996, %v995
      %v1048 = vpack.c.bf16 %v998, %v997
      %v1049 = vpack.c.bf16 %v1000, %v999
      %v1050 = vpack.c.bf16 %v1002, %v1001
      %v1051 = vpack.c.bf16 %v1004, %v1003
      %v1052 = vpack.c.bf16 %v1006, %v1005
      %v1053 = vpack.c.bf16 %v1008, %v1007
      %v1054 = vpack.c.bf16 %v1010, %v1009
      %v1055 = vpack.c.bf16 %v1012, %v1011
      %v1056 = vpack.c.bf16 %v1014, %v1013
      %v1057 = vpack.c.bf16 %v1016, %v1015
      %v1058 = vpack.c.bf16 %v1018, %v1017
      %v1059 = vpack.c.bf16 %v1020, %v1019
      %v1060 = vpack.c.bf16 %v1022, %v1021
      %v1061 = vpack.c.bf16 %v1024, %v1023
      %v1062 = vpack.c.bf16 %v1026, %v1025
      %v1063 = vpack.c.bf16 %v1028, %v1027
      %v1064 = vpack.c.bf16 %v1030, %v1029
      %v1065 = vpack.c.bf16 %v1032, %v1031
      %v1066 = vpack.c.bf16 %v1034, %v1033
      %v1067 = vld [vmem:[%s4] sm:$0xf]
      %v1068 = vld [vmem:[%s4 + $0x4] sm:$0xf]
      %v1069 = vld [vmem:[%s4 + $0x8] sm:$0xf]
      %v1070 = vld [vmem:[%s4 + $0xc] sm:$0xf]
      %v1071 = vld [vmem:[%s4 + $0x10] sm:$0xf]
      %v1072 = vld [vmem:[%s4 + $0x14] sm:$0xf]
      %v1073 = vld [vmem:[%s4 + $0x18] sm:$0xf]
      %v1074 = vld [vmem:[%s4 + $0x1c] sm:$0xf]
      %v1075 = vld [vmem:[%s4 + $0x20] sm:$0xf]
      %v1076 = vld [vmem:[%s4 + $0x24] sm:$0xf]
      %v1077 = vld [vmem:[%s4 + $0x28] sm:$0xf]
      %v1078 = vld [vmem:[%s4 + $0x2c] sm:$0xf]
      %v1079 = vld [vmem:[%s4 + $0x30] sm:$0xf]
      %v1080 = vld [vmem:[%s4 + $0x34] sm:$0xf]
      %v1081 = vld [vmem:[%s4 + $0x38] sm:$0xf]
      %v1082 = vld [vmem:[%s4 + $0x3c] sm:$0xf]
      %v1083 = vld [vmem:[%s5] sm:$0x1]
      %v1085 = vlaneseq
      %v1086 = vshrl.u32 %v1085, 7
      %v1087 = vsub.s32 0, %v1086
      %v1088 = vrot.slane %v1083, %v1087
      %v1106 = vunpack.c.l.b16 %v1067
      %v1107 = vunpack.c.l.b16 %v1068
      %v1108 = vunpack.c.l.b16 %v1069
      %v1109 = vunpack.c.l.b16 %v1070
      %v1110 = vunpack.c.l.b16 %v1071
      %v1111 = vunpack.c.l.b16 %v1072
      %v1112 = vunpack.c.l.b16 %v1073
      %v1113 = vunpack.c.l.b16 %v1074
      %v1114 = vunpack.c.l.b16 %v1075
      %v1115 = vunpack.c.l.b16 %v1076
      %v1116 = vunpack.c.l.b16 %v1077
      %v1117 = vunpack.c.l.b16 %v1078
      %v1118 = vunpack.c.l.b16 %v1079
      %v1119 = vunpack.c.l.b16 %v1080
      %v1120 = vunpack.c.l.b16 %v1081
      %v1121 = vunpack.c.l.b16 %v1082
      %v1122 = vpack.c.b16 %v1107, %v1106
      %v1123 = vpack.c.b16 %v1109, %v1108
      %v1124 = vpack.c.b16 %v1111, %v1110
      %v1125 = vpack.c.b16 %v1113, %v1112
      %v1126 = vpack.c.b16 %v1115, %v1114
      %v1127 = vpack.c.b16 %v1117, %v1116
      %v1128 = vpack.c.b16 %v1119, %v1118
      %v1129 = vpack.c.b16 %v1121, %v1120
      %1138 = vmatprep.subr.bf16.mxu0 0
      %1139 = vmatpush1.bf16.msra.mxu0 %v1122
      %1140 = vmatprep.subr.bf16.mxu0 0
      %1141 = vmatpush1.bf16.msra.mxu0 %v1123
      %1142 = vmatprep.subr.bf16.mxu0 0
      %1143 = vmatpush1.bf16.msra.mxu0 %v1124
      %1144 = vmatprep.subr.bf16.mxu0 0
      %1145 = vmatpush1.bf16.msra.mxu0 %v1125
      %1146 = vmatprep.subr.bf16.mxu0 0
      %1147 = vmatpush1.bf16.msra.mxu0 %v1126
      %1148 = vmatprep.subr.bf16.mxu0 0
      %1149 = vmatpush1.bf16.msra.mxu0 %v1127
      %1150 = vmatprep.subr.bf16.mxu0 0
      %1151 = vmatpush1.bf16.msra.mxu0 %v1128
      %1152 = vmatprep.subr.bf16.mxu0 0
      %1153 = vmatpush1.bf16.msra.mxu0 %v1129
      %1154 = vmatprep.subr.bf16.mxu0 0
      %1155 = vmatpush1.bf16.msra.mxu0 0
      %1156 = vmatprep.subr.bf16.mxu0 0
      %1157 = vmatpush1.bf16.msra.mxu0 0
      %1158 = vmatprep.subr.bf16.mxu0 0
      %1159 = vmatpush1.bf16.msra.mxu0 0
      %1160 = vmatprep.subr.bf16.mxu0 0
      %1161 = vmatpush1.bf16.msra.mxu0 0
      %1162 = vmatprep.subr.bf16.mxu0 0
      %1163 = vmatpush1.bf16.msra.mxu0 0
      %1164 = vmatprep.subr.bf16.mxu0 0
      %1165 = vmatpush1.bf16.msra.mxu0 0
      %1166 = vmatprep.subr.bf16.mxu0 0
      %1167 = vmatpush1.bf16.msra.mxu0 0
      %1168 = vmatprep.subr.bf16.mxu0 0
      %1169 = vmatpush1.bf16.msra.mxu0 0
      %1170 = vmatprep.mubr.bf16.mxu0 0
      %1171 = vmatmul.mubr.bf16.gmra.mrb[0].mxu0 %v1035
      %v1172 = vpop.f32.mrb[0].mxu0
      %v1173 = vadd.f32 %v1088, %v1172
      %v1174 = vpop.f32.mrb[0].mxu0
      %v1175 = vpop.f32.mrb[0].mxu0
      %v1176 = vadd.f32 %v1088, %v1175
      %v1177 = vpop.f32.mrb[0].mxu0
      %1178 = vmatprep.mubr.bf16.mxu0 0
      %1179 = vmatmul.mubr.bf16.gmra.mrb[0].mxu0 %v1036
      %v1180 = vpop.f32.mrb[0].mxu0
      %v1181 = vadd.f32 %v1088, %v1180
      %v1182 = vpop.f32.mrb[0].mxu0
      %v1183 = vpop.f32.mrb[0].mxu0
      %v1184 = vadd.f32 %v1088, %v1183
      %v1185 = vpop.f32.mrb[0].mxu0
      %1186 = vmatprep.mubr.bf16.mxu0 0
      %1187 = vmatmul.mubr.bf16.gmra.mrb[0].mxu0 %v1037
      %v1188 = vpop.f32.mrb[0].mxu0
      %v1189 = vadd.f32 %v1088, %v1188
      %v1190 = vpop.f32.mrb[0].mxu0
      %v1191 = vpop.f32.mrb[0].mxu0
      %v1192 = vadd.f32 %v1088, %v1191
      %v1193 = vpop.f32.mrb[0].mxu0
      %1194 = vmatprep.mubr.bf16.mxu0 0
      %1195 = vmatmul.mubr.bf16.gmra.mrb[0].mxu0 %v1038
      %v1196 = vpop.f32.mrb[0].mxu0
      %v1197 = vadd.f32 %v1088, %v1196
      %v1198 = vpop.f32.mrb[0].mxu0
      %v1199 = vpop.f32.mrb[0].mxu0
      %v1200 = vadd.f32 %v1088, %v1199
      %v1201 = vpop.f32.mrb[0].mxu0
      %1202 = vmatprep.mubr.bf16.mxu0 0
      %1203 = vmatmul.mubr.bf16.gmra.mrb[0].mxu0 %v1039
      %v1204 = vpop.f32.mrb[0].mxu0
      %v1205 = vadd.f32 %v1088, %v1204
      %v1206 = vpop.f32.mrb[0].mxu0
      %v1207 = vpop.f32.mrb[0].mxu0
      %v1208 = vadd.f32 %v1088, %v1207
      %v1209 = vpop.f32.mrb[0].mxu0
      %1210 = vmatprep.mubr.bf16.mxu0 0
      %1211 = vmatmul.mubr.bf16.gmra.mrb[0].mxu0 %v1040
      %v1212 = vpop.f32.mrb[0].mxu0
      %v1213 = vadd.f32 %v1088, %v1212
      %v1214 = vpop.f32.mrb[0].mxu0
      %v1215 = vpop.f32.mrb[0].mxu0
      %v1216 = vadd.f32 %v1088, %v1215
      %v1217 = vpop.f32.mrb[0].mxu0
      %1218 = vmatprep.mubr.bf16.mxu0 0
      %1219 = vmatmul.mubr.bf16.gmra.mrb[0].mxu0 %v1041
      %v1220 = vpop.f32.mrb[0].mxu0
      %v1221 = vadd.f32 %v1088, %v1220
      %v1222 = vpop.f32.mrb[0].mxu0
      %v1223 = vpop.f32.mrb[0].mxu0
      %v1224 = vadd.f32 %v1088, %v1223
      %v1225 = vpop.f32.mrb[0].mxu0
      %1226 = vmatprep.mubr.bf16.mxu0 0
      %1227 = vmatmul.mubr.bf16.gmra.mrb[0].mxu0 %v1042
      %v1228 = vpop.f32.mrb[0].mxu0
      %v1229 = vadd.f32 %v1088, %v1228
      %v1230 = vpop.f32.mrb[0].mxu0
      %v1231 = vpop.f32.mrb[0].mxu0
      %v1232 = vadd.f32 %v1088, %v1231
      %v1233 = vpop.f32.mrb[0].mxu0
      %1234 = vmatprep.mubr.bf16.mxu0 0
      %1235 = vmatmul.mubr.bf16.gmra.mrb[0].mxu0 %v1043
      %v1236 = vpop.f32.mrb[0].mxu0
      %v1237 = vadd.f32 %v1088, %v1236
      %v1238 = vpop.f32.mrb[0].mxu0
      %v1239 = vpop.f32.mrb[0].mxu0
      %v1240 = vadd.f32 %v1088, %v1239
      %v1241 = vpop.f32.mrb[0].mxu0
      %1242 = vmatprep.mubr.bf16.mxu0 0
      %1243 = vmatmul.mubr.bf16.gmra.mrb[0].mxu0 %v1044
      %v1244 = vpop.f32.mrb[0].mxu0
      %v1245 = vadd.f32 %v1088, %v1244
      %v1246 = vpop.f32.mrb[0].mxu0
      %v1247 = vpop.f32.mrb[0].mxu0
      %v1248 = vadd.f32 %v1088, %v1247
      %v1249 = vpop.f32.mrb[0].mxu0
      %1250 = vmatprep.mubr.bf16.mxu0 0
      %1251 = vmatmul.mubr.bf16.gmra.mrb[0].mxu0 %v1045
      %v1252 = vpop.f32.mrb[0].mxu0
      %v1253 = vadd.f32 %v1088, %v1252
      %v1254 = vpop.f32.mrb[0].mxu0
      %v1255 = vpop.f32.mrb[0].mxu0
      %v1256 = vadd.f32 %v1088, %v1255
      %v1257 = vpop.f32.mrb[0].mxu0
      %1258 = vmatprep.mubr.bf16.mxu0 0
      %1259 = vmatmul.mubr.bf16.gmra.mrb[0].mxu0 %v1046
      %v1260 = vpop.f32.mrb[0].mxu0
      %v1261 = vadd.f32 %v1088, %v1260
      %v1262 = vpop.f32.mrb[0].mxu0
      %v1263 = vpop.f32.mrb[0].mxu0
      %v1264 = vadd.f32 %v1088, %v1263
      %v1265 = vpop.f32.mrb[0].mxu0
      %1266 = vmatprep.mubr.bf16.mxu0 0
      %1267 = vmatmul.mubr.bf16.gmra.mrb[0].mxu0 %v1047
      %v1268 = vpop.f32.mrb[0].mxu0
      %v1269 = vadd.f32 %v1088, %v1268
      %v1270 = vpop.f32.mrb[0].mxu0
      %v1271 = vpop.f32.mrb[0].mxu0
      %v1272 = vadd.f32 %v1088, %v1271
      %v1273 = vpop.f32.mrb[0].mxu0
      %1274 = vmatprep.mubr.bf16.mxu0 0
      %1275 = vmatmul.mubr.bf16.gmra.mrb[0].mxu0 %v1048
      %v1276 = vpop.f32.mrb[0].mxu0
      %v1277 = vadd.f32 %v1088, %v1276
      %v1278 = vpop.f32.mrb[0].mxu0
      %v1279 = vpop.f32.mrb[0].mxu0
      %v1280 = vadd.f32 %v1088, %v1279
      %v1281 = vpop.f32.mrb[0].mxu0
      %1282 = vmatprep.mubr.bf16.mxu0 0
      %1283 = vmatmul.mubr.bf16.gmra.mrb[0].mxu0 %v1049
      %v1284 = vpop.f32.mrb[0].mxu0
      %v1285 = vadd.f32 %v1088, %v1284
      %v1286 = vpop.f32.mrb[0].mxu0
      %v1287 = vpop.f32.mrb[0].mxu0
      %v1288 = vadd.f32 %v1088, %v1287
      %v1289 = vpop.f32.mrb[0].mxu0
      %1290 = vmatprep.mubr.bf16.mxu0 0
      %1291 = vmatmul.mubr.bf16.gmra.mrb[0].mxu0 %v1050
      %v1292 = vpop.f32.mrb[0].mxu0
      %v1293 = vadd.f32 %v1088, %v1292
      %v1294 = vpop.f32.mrb[0].mxu0
      %v1295 = vpop.f32.mrb[0].mxu0
      %v1296 = vadd.f32 %v1088, %v1295
      %v1297 = vpop.f32.mrb[0].mxu0
      %1298 = vmatprep.mubr.bf16.mxu0 0
      %1299 = vmatmul.mubr.bf16.gmra.mrb[0].mxu0 %v1051
      %v1300 = vpop.f32.mrb[0].mxu0
      %v1301 = vadd.f32 %v1088, %v1300
      %v1302 = vpop.f32.mrb[0].mxu0
      %v1303 = vpop.f32.mrb[0].mxu0
      %v1304 = vadd.f32 %v1088, %v1303
      %v1305 = vpop.f32.mrb[0].mxu0
      %1306 = vmatprep.mubr.bf16.mxu0 0
      %1307 = vmatmul.mubr.bf16.gmra.mrb[0].mxu0 %v1052
      %v1308 = vpop.f32.mrb[0].mxu0
      %v1309 = vadd.f32 %v1088, %v1308
      %v1310 = vpop.f32.mrb[0].mxu0
      %v1311 = vpop.f32.mrb[0].mxu0
      %v1312 = vadd.f32 %v1088, %v1311
      %v1313 = vpop.f32.mrb[0].mxu0
      %1314 = vmatprep.mubr.bf16.mxu0 0
      %1315 = vmatmul.mubr.bf16.gmra.mrb[0].mxu0 %v1053
      %v1316 = vpop.f32.mrb[0].mxu0
      %v1317 = vadd.f32 %v1088, %v1316
      %v1318 = vpop.f32.mrb[0].mxu0
      %v1319 = vpop.f32.mrb[0].mxu0
      %v1320 = vadd.f32 %v1088, %v1319
      %v1321 = vpop.f32.mrb[0].mxu0
      %1322 = vmatprep.mubr.bf16.mxu0 0
      %1323 = vmatmul.mubr.bf16.gmra.mrb[0].mxu0 %v1054
      %v1324 = vpop.f32.mrb[0].mxu0
      %v1325 = vadd.f32 %v1088, %v1324
      %v1326 = vpop.f32.mrb[0].mxu0
      %v1327 = vpop.f32.mrb[0].mxu0
      %v1328 = vadd.f32 %v1088, %v1327
      %v1329 = vpop.f32.mrb[0].mxu0
      %1330 = vmatprep.mubr.bf16.mxu0 0
      %1331 = vmatmul.mubr.bf16.gmra.mrb[0].mxu0 %v1055
      %v1332 = vpop.f32.mrb[0].mxu0
      %v1333 = vadd.f32 %v1088, %v1332
      %v1334 = vpop.f32.mrb[0].mxu0
      %v1335 = vpop.f32.mrb[0].mxu0
      %v1336 = vadd.f32 %v1088, %v1335
      %v1337 = vpop.f32.mrb[0].mxu0
      %1338 = vmatprep.mubr.bf16.mxu0 0
      %1339 = vmatmul.mubr.bf16.gmra.mrb[0].mxu0 %v1056
      %v1340 = vpop.f32.mrb[0].mxu0
      %v1341 = vadd.f32 %v1088, %v1340
      %v1342 = vpop.f32.mrb[0].mxu0
      %v1343 = vpop.f32.mrb[0].mxu0
      %v1344 = vadd.f32 %v1088, %v1343
      %v1345 = vpop.f32.mrb[0].mxu0
      %1346 = vmatprep.mubr.bf16.mxu0 0
      %1347 = vmatmul.mubr.bf16.gmra.mrb[0].mxu0 %v1057
      %v1348 = vpop.f32.mrb[0].mxu0
      %v1349 = vadd.f32 %v1088, %v1348
      %v1350 = vpop.f32.mrb[0].mxu0
      %v1351 = vpop.f32.mrb[0].mxu0
      %v1352 = vadd.f32 %v1088, %v1351
      %v1353 = vpop.f32.mrb[0].mxu0
      %1354 = vmatprep.mubr.bf16.mxu0 0
      %1355 = vmatmul.mubr.bf16.gmra.mrb[0].mxu0 %v1058
      %v1356 = vpop.f32.mrb[0].mxu0
      %v1357 = vadd.f32 %v1088, %v1356
      %v1358 = vpop.f32.mrb[0].mxu0
      %v1359 = vpop.f32.mrb[0].mxu0
      %v1360 = vadd.f32 %v1088, %v1359
      %v1361 = vpop.f32.mrb[0].mxu0
      %1362 = vmatprep.mubr.bf16.mxu0 0
      %1363 = vmatmul.mubr.bf16.gmra.mrb[0].mxu0 %v1059
      %v1364 = vpop.f32.mrb[0].mxu0
      %v1365 = vadd.f32 %v1088, %v1364
      %v1366 = vpop.f32.mrb[0].mxu0
      %v1367 = vpop.f32.mrb[0].mxu0
      %v1368 = vadd.f32 %v1088, %v1367
      %v1369 = vpop.f32.mrb[0].mxu0
      %1370 = vmatprep.mubr.bf16.mxu0 0
      %1371 = vmatmul.mubr.bf16.gmra.mrb[0].mxu0 %v1060
      %v1372 = vpop.f32.mrb[0].mxu0
      %v1373 = vadd.f32 %v1088, %v1372
      %v1374 = vpop.f32.mrb[0].mxu0
      %v1375 = vpop.f32.mrb[0].mxu0
      %v1376 = vadd.f32 %v1088, %v1375
      %v1377 = vpop.f32.mrb[0].mxu0
      %1378 = vmatprep.mubr.bf16.mxu0 0
      %1379 = vmatmul.mubr.bf16.gmra.mrb[0].mxu0 %v1061
      %v1380 = vpop.f32.mrb[0].mxu0
      %v1381 = vadd.f32 %v1088, %v1380
      %v1382 = vpop.f32.mrb[0].mxu0
      %v1383 = vpop.f32.mrb[0].mxu0
      %v1384 = vadd.f32 %v1088, %v1383
      %v1385 = vpop.f32.mrb[0].mxu0
      %1386 = vmatprep.mubr.bf16.mxu0 0
      %1387 = vmatmul.mubr.bf16.gmra.mrb[0].mxu0 %v1062
      %v1388 = vpop.f32.mrb[0].mxu0
      %v1389 = vadd.f32 %v1088, %v1388
      %v1390 = vpop.f32.mrb[0].mxu0
      %v1391 = vpop.f32.mrb[0].mxu0
      %v1392 = vadd.f32 %v1088, %v1391
      %v1393 = vpop.f32.mrb[0].mxu0
      %1394 = vmatprep.mubr.bf16.mxu0 0
      %1395 = vmatmul.mubr.bf16.gmra.mrb[0].mxu0 %v1063
      %v1396 = vpop.f32.mrb[0].mxu0
      %v1397 = vadd.f32 %v1088, %v1396
      %v1398 = vpop.f32.mrb[0].mxu0
      %v1399 = vpop.f32.mrb[0].mxu0
      %v1400 = vadd.f32 %v1088, %v1399
      %v1401 = vpop.f32.mrb[0].mxu0
      %1402 = vmatprep.mubr.bf16.mxu0 0
      %1403 = vmatmul.mubr.bf16.gmra.mrb[0].mxu0 %v1064
      %v1404 = vpop.f32.mrb[0].mxu0
      %v1405 = vadd.f32 %v1088, %v1404
      %v1406 = vpop.f32.mrb[0].mxu0
      %v1407 = vpop.f32.mrb[0].mxu0
      %v1408 = vadd.f32 %v1088, %v1407
      %v1409 = vpop.f32.mrb[0].mxu0
      %1410 = vmatprep.mubr.bf16.mxu0 0
      %1411 = vmatmul.mubr.bf16.gmra.mrb[0].mxu0 %v1065
      %v1412 = vpop.f32.mrb[0].mxu0
      %v1413 = vadd.f32 %v1088, %v1412
      %v1414 = vpop.f32.mrb[0].mxu0
      %v1415 = vpop.f32.mrb[0].mxu0
      %v1416 = vadd.f32 %v1088, %v1415
      %v1417 = vpop.f32.mrb[0].mxu0
      %1418 = vmatprep.mubr.bf16.mxu0 0
      %1419 = vmatmul.mubr.bf16.gmra.mrb[0].mxu0 %v1066
      %v1420 = vpop.f32.mrb[0].mxu0
      %v1421 = vadd.f32 %v1088, %v1420
      %v1422 = vpop.f32.mrb[0].mxu0
      %v1423 = vpop.f32.mrb[0].mxu0
      %v1424 = vadd.f32 %v1088, %v1423
      %v1425 = vpop.f32.mrb[0].mxu0
      %1426 = vdwg.mxu0
      %v1427 = vmax.f32 %v1173, 0.0
      %v1428 = vmax.f32 %v1176, 0.0
      %v1429 = vmax.f32 %v1181, 0.0
      %v1430 = vmax.f32 %v1184, 0.0
      %v1431 = vmax.f32 %v1189, 0.0
      %v1432 = vmax.f32 %v1192, 0.0
      %v1433 = vmax.f32 %v1197, 0.0
      %v1434 = vmax.f32 %v1200, 0.0
      %v1435 = vmax.f32 %v1205, 0.0
      %v1436 = vmax.f32 %v1208, 0.0
      %v1437 = vmax.f32 %v1213, 0.0
      %v1438 = vmax.f32 %v1216, 0.0
      %v1439 = vmax.f32 %v1221, 0.0
      %v1440 = vmax.f32 %v1224, 0.0
      %v1441 = vmax.f32 %v1229, 0.0
      %v1442 = vmax.f32 %v1232, 0.0
      %v1443 = vmax.f32 %v1237, 0.0
      %v1444 = vmax.f32 %v1240, 0.0
      %v1445 = vmax.f32 %v1245, 0.0
      %v1446 = vmax.f32 %v1248, 0.0
      %v1447 = vmax.f32 %v1253, 0.0
      %v1448 = vmax.f32 %v1256, 0.0
      %v1449 = vmax.f32 %v1261, 0.0
      %v1450 = vmax.f32 %v1264, 0.0
      %v1451 = vmax.f32 %v1269, 0.0
      %v1452 = vmax.f32 %v1272, 0.0
      %v1453 = vmax.f32 %v1277, 0.0
      %v1454 = vmax.f32 %v1280, 0.0
      %v1455 = vmax.f32 %v1285, 0.0
      %v1456 = vmax.f32 %v1288, 0.0
      %v1457 = vmax.f32 %v1293, 0.0
      %v1458 = vmax.f32 %v1296, 0.0
      %v1459 = vmax.f32 %v1301, 0.0
      %v1460 = vmax.f32 %v1304, 0.0
      %v1461 = vmax.f32 %v1309, 0.0
      %v1462 = vmax.f32 %v1312, 0.0
      %v1463 = vmax.f32 %v1317, 0.0
      %v1464 = vmax.f32 %v1320, 0.0
      %v1465 = vmax.f32 %v1325, 0.0
      %v1466 = vmax.f32 %v1328, 0.0
      %v1467 = vmax.f32 %v1333, 0.0
      %v1468 = vmax.f32 %v1336, 0.0
      %v1469 = vmax.f32 %v1341, 0.0
      %v1470 = vmax.f32 %v1344, 0.0
      %v1471 = vmax.f32 %v1349, 0.0
      %v1472 = vmax.f32 %v1352, 0.0
      %v1473 = vmax.f32 %v1357, 0.0
      %v1474 = vmax.f32 %v1360, 0.0
      %v1475 = vmax.f32 %v1365, 0.0
      %v1476 = vmax.f32 %v1368, 0.0
      %v1477 = vmax.f32 %v1373, 0.0
      %v1478 = vmax.f32 %v1376, 0.0
      %v1479 = vmax.f32 %v1381, 0.0
      %v1480 = vmax.f32 %v1384, 0.0
      %v1481 = vmax.f32 %v1389, 0.0
      %v1482 = vmax.f32 %v1392, 0.0
      %v1483 = vmax.f32 %v1397, 0.0
      %v1484 = vmax.f32 %v1400, 0.0
      %v1485 = vmax.f32 %v1405, 0.0
      %v1486 = vmax.f32 %v1408, 0.0
      %v1487 = vmax.f32 %v1413, 0.0
      %v1488 = vmax.f32 %v1416, 0.0
      %v1489 = vmax.f32 %v1421, 0.0
      %v1490 = vmax.f32 %v1424, 0.0
      %v1491 = vld [vmem:[%s6] sm:$0x1]
      %v1492 = vpack.c.bf16 %v1428, %v1427
      %v1493 = vpack.c.bf16 %v1430, %v1429
      %v1494 = vpack.c.bf16 %v1432, %v1431
      %v1495 = vpack.c.bf16 %v1434, %v1433
      %v1496 = vpack.c.bf16 %v1436, %v1435
      %v1497 = vpack.c.bf16 %v1438, %v1437
      %v1498 = vpack.c.bf16 %v1440, %v1439
      %v1499 = vpack.c.bf16 %v1442, %v1441
      %v1500 = vpack.c.bf16 %v1444, %v1443
      %v1501 = vpack.c.bf16 %v1446, %v1445
      %v1502 = vpack.c.bf16 %v1448, %v1447
      %v1503 = vpack.c.bf16 %v1450, %v1449
      %v1504 = vpack.c.bf16 %v1452, %v1451
      %v1505 = vpack.c.bf16 %v1454, %v1453
      %v1506 = vpack.c.bf16 %v1456, %v1455
      %v1507 = vpack.c.bf16 %v1458, %v1457
      %v1508 = vpack.c.bf16 %v1460, %v1459
      %v1509 = vpack.c.bf16 %v1462, %v1461
      %v1510 = vpack.c.bf16 %v1464, %v1463
      %v1511 = vpack.c.bf16 %v1466, %v1465
      %v1512 = vpack.c.bf16 %v1468, %v1467
      %v1513 = vpack.c.bf16 %v1470, %v1469
      %v1514 = vpack.c.bf16 %v1472, %v1471
      %v1515 = vpack.c.bf16 %v1474, %v1473
      %v1516 = vpack.c.bf16 %v1476, %v1475
      %v1517 = vpack.c.bf16 %v1478, %v1477
      %v1518 = vpack.c.bf16 %v1480, %v1479
      %v1519 = vpack.c.bf16 %v1482, %v1481
      %v1520 = vpack.c.bf16 %v1484, %v1483
      %v1521 = vpack.c.bf16 %v1486, %v1485
      %v1522 = vpack.c.bf16 %v1488, %v1487
      %v1523 = vpack.c.bf16 %v1490, %v1489
      %vm1524 = vcmask 523264
      %v1526 = vsel %vm1524, %v1491, 0
      %v1529 = vsel %vm1524, %v1492, 0
      %v1532 = vsel %vm1524, %v1493, 0
      %v1535 = vsel %vm1524, %v1494, 0
      %v1538 = vsel %vm1524, %v1495, 0
      %v1541 = vsel %vm1524, %v1496, 0
      %v1544 = vsel %vm1524, %v1497, 0
      %v1547 = vsel %vm1524, %v1498, 0
      %v1550 = vsel %vm1524, %v1499, 0
      %v1553 = vsel %vm1524, %v1500, 0
      %v1556 = vsel %vm1524, %v1501, 0
      %v1559 = vsel %vm1524, %v1502, 0
      %v1562 = vsel %vm1524, %v1503, 0
      %v1565 = vsel %vm1524, %v1504, 0
      %v1568 = vsel %vm1524, %v1505, 0
      %v1571 = vsel %vm1524, %v1506, 0
      %v1574 = vsel %vm1524, %v1507, 0
      %v1577 = vsel %vm1524, %v1508, 0
      %v1580 = vsel %vm1524, %v1509, 0
      %v1583 = vsel %vm1524, %v1510, 0
      %v1586 = vsel %vm1524, %v1511, 0
      %v1589 = vsel %vm1524, %v1512, 0
      %v1592 = vsel %vm1524, %v1513, 0
      %v1595 = vsel %vm1524, %v1514, 0
      %v1598 = vsel %vm1524, %v1515, 0
      %v1601 = vsel %vm1524, %v1516, 0
      %v1604 = vsel %vm1524, %v1517, 0
      %v1607 = vsel %vm1524, %v1518, 0
      %v1610 = vsel %vm1524, %v1519, 0
      %v1613 = vsel %vm1524, %v1520, 0
      %v1616 = vsel %vm1524, %v1521, 0
      %v1619 = vsel %vm1524, %v1522, 0
      %v1622 = vsel %vm1524, %v1523, 0
      %1624 = vmatprep.subr.bf16.mxu0 0
      %1625 = vmatpush1.bf16.xpose.msra.mxu0 %v1529
      %1626 = vmatprep.subr.bf16.mxu0 0
      %1627 = vmatpush1.bf16.xpose.msra.mxu0 %v1532
      %1628 = vmatprep.subr.bf16.mxu0 0
      %1629 = vmatpush1.bf16.xpose.msra.mxu0 %v1535
      %1630 = vmatprep.subr.bf16.mxu0 0
      %1631 = vmatpush1.bf16.xpose.msra.mxu0 %v1538
      %1632 = vmatprep.subr.bf16.mxu0 0
      %1633 = vmatpush1.bf16.xpose.msra.mxu0 %v1541
      %1634 = vmatprep.subr.bf16.mxu0 0
      %1635 = vmatpush1.bf16.xpose.msra.mxu0 %v1544
      %1636 = vmatprep.subr.bf16.mxu0 0
      %1637 = vmatpush1.bf16.xpose.msra.mxu0 %v1547
      %1638 = vmatprep.subr.bf16.mxu0 0
      %1639 = vmatpush1.bf16.xpose.msra.mxu0 %v1550
      %1640 = vmatprep.subr.bf16.mxu0 0
      %1641 = vmatpush1.bf16.xpose.msra.mxu0 %v1553
      %1642 = vmatprep.subr.bf16.mxu0 0
      %1643 = vmatpush1.bf16.xpose.msra.mxu0 %v1556
      %1644 = vmatprep.subr.bf16.mxu0 0
      %1645 = vmatpush1.bf16.xpose.msra.mxu0 %v1559
      %1646 = vmatprep.subr.bf16.mxu0 0
      %1647 = vmatpush1.bf16.xpose.msra.mxu0 %v1562
      %1648 = vmatprep.subr.bf16.mxu0 0
      %1649 = vmatpush1.bf16.xpose.msra.mxu0 %v1565
      %1650 = vmatprep.subr.bf16.mxu0 0
      %1651 = vmatpush1.bf16.xpose.msra.mxu0 %v1568
      %1652 = vmatprep.subr.bf16.mxu0 0
      %1653 = vmatpush1.bf16.xpose.msra.mxu0 %v1571
      %1654 = vmatprep.subr.bf16.mxu0 0
      %1655 = vmatpush1.bf16.xpose.msra.mxu0 %v1574
      %1656 = vmatprep.mubr.bf16.mxu0 0
      %1657 = vmatmul.mubr.bf16.gmra.mrb[0].mxu0 %v1526
      %v1658 = vpop.f32.mrb[0].mxu0
      %v1659 = vadd.f32 0.0, %v1658
      %v1660 = vpop.f32.mrb[0].mxu0
      %v1661 = vadd.f32 0.0, %v1660
      %v1662 = vpop.f32.mrb[0].mxu0
      %v1663 = vpop.f32.mrb[0].mxu0
      %1664 = vdwg.mxu0
      %1665 = vmatprep.subr.bf16.mxu0 0
      %1666 = vmatpush1.bf16.xpose.msra.mxu0 %v1577
      %1667 = vmatprep.subr.bf16.mxu0 0
      %1668 = vmatpush1.bf16.xpose.msra.mxu0 %v1580
      %1669 = vmatprep.subr.bf16.mxu0 0
      %1670 = vmatpush1.bf16.xpose.msra.mxu0 %v1583
      %1671 = vmatprep.subr.bf16.mxu0 0
      %1672 = vmatpush1.bf16.xpose.msra.mxu0 %v1586
      %1673 = vmatprep.subr.bf16.mxu0 0
      %1674 = vmatpush1.bf16.xpose.msra.mxu0 %v1589
      %1675 = vmatprep.subr.bf16.mxu0 0
      %1676 = vmatpush1.bf16.xpose.msra.mxu0 %v1592
      %1677 = vmatprep.subr.bf16.mxu0 0
      %1678 = vmatpush1.bf16.xpose.msra.mxu0 %v1595
      %1679 = vmatprep.subr.bf16.mxu0 0
      %1680 = vmatpush1.bf16.xpose.msra.mxu0 %v1598
      %1681 = vmatprep.subr.bf16.mxu0 0
      %1682 = vmatpush1.bf16.xpose.msra.mxu0 %v1601
      %1683 = vmatprep.subr.bf16.mxu0 0
      %1684 = vmatpush1.bf16.xpose.msra.mxu0 %v1604
      %1685 = vmatprep.subr.bf16.mxu0 0
      %1686 = vmatpush1.bf16.xpose.msra.mxu0 %v1607
      %1687 = vmatprep.subr.bf16.mxu0 0
      %1688 = vmatpush1.bf16.xpose.msra.mxu0 %v1610
      %1689 = vmatprep.subr.bf16.mxu0 0
      %1690 = vmatpush1.bf16.xpose.msra.mxu0 %v1613
      %1691 = vmatprep.subr.bf16.mxu0 0
      %1692 = vmatpush1.bf16.xpose.msra.mxu0 %v1616
      %1693 = vmatprep.subr.bf16.mxu0 0
      %1694 = vmatpush1.bf16.xpose.msra.mxu0 %v1619
      %1695 = vmatprep.subr.bf16.mxu0 0
      %1696 = vmatpush1.bf16.xpose.msra.mxu0 %v1622
      %1697 = vmatprep.mubr.bf16.mxu0 0
      %1698 = vmatmul.mubr.bf16.gmra.mrb[0].mxu0 %v1526
      %v1699 = vpop.f32.mrb[0].mxu0
      %v1700 = vadd.f32 0.0, %v1699
      %v1701 = vpop.f32.mrb[0].mxu0
      %v1702 = vadd.f32 0.0, %v1701
      %v1703 = vpop.f32.mrb[0].mxu0
      %v1704 = vpop.f32.mrb[0].mxu0
      %1705 = vdwg.mxu0
      %v1706 = vld [vmem:[%s323] sm:$0xff]
      %v1711 = vcombine.low %v1659, %v1661
      %v1712 = vcombine.low %v1700, %v1702
      %v1714 = vunpack.c.l.s4 1983009808
      %v1715 = vunpack.c.0.s8 %v1714
      %v1716 = vlaneseq
      %v1717 = vshrl.u32 %v1716, 7
      %v1718 = vsub.s32 %v1715, %v1717
      %v1719 = vrot.slane %v1711, %v1718
      %v1721 = vunpack.c.l.s4 1983009808
      %v1722 = vunpack.c.0.s8 %v1721
      %v1723 = vlaneseq
      %v1724 = vshrl.u32 %v1723, 7
      %v1725 = vsub.s32 %v1722, %v1724
      %v1726 = vrot.slane %v1712, %v1725
      %v1727 = vcombine.low %v1719, %v1726
      %v1729 = vadd.f32 %v1706, %v1727
      %v1730 = vld [vmem:[%s7] sm:$0x3]
      %1732 = vset.pattern.permute.xlu0 0
      %1733 = vperm.xlu0 %1732, %v1730
      %v1734 = vpop.permute.xlu0 %1733
      %v1736 = vunpack.c.l.s4 269488144
      %v1737 = vunpack.c.0.s8 %v1736
      %v1738 = vlaneseq
      %v1739 = vshrl.u32 %v1738, 7
      %v1740 = vsub.s32 %v1737, %v1739
      %v1741 = vrot.slane %v1734, %v1740
      %v1743 = vadd.f32 %v1729, %v1741
      %1744 = vst [vmem:[%s329] sm:$0xff] %v1743
      %s1745 = smul.u32 4, %s19
      %p1746 = scmp.lt.s32.totalorder %s1745, 7
      %s1747 = scalar_select %p1746, %s1745, 7
      %s1748 = smul.addr %s1747, 2
      %s1749 = scalar_lea.vmem %s8, %s1748
      // Predicated region
      $region53: #{a_call__.1} parent=51 // pred_check
        %p1750 = pneg %p215
      $region54: #{a_call__.1} parent=51 // pred_check_branch
        %1752 = sbr.rel (%p1750) target = $region56
      $region55: #{a_call__.1} parent=51 // pred_region
        %s1753 = smul.u32 4, %s19
      $region56: #{a_call__.1} parent=51 // pred_fallthru
        _
    $region52: #{a_call__.1} parent=5 // pred_fallthru
      _
    %p1754 = scmp.le.s32.totalorder 2, %s14
    // Predicated region
    $region57: #{a_call__.1} parent=5 // pred_check
      %p1755 = pneg %p1754
    $region58: #{a_call__.1} parent=5 // pred_check_branch
      %1757 = sbr.rel (%p1755) target = $region60
    $region59: #{a_call__.1} parent=5 // pred_region
      %s1758 = ssub.s32 %s14, 2
      // Predicated region
      $region61: #{a_call__.1} parent=59 // pred_check
        %p1759 = pneg %p221
      $region62: #{a_call__.1} parent=59 // pred_check_branch
        %1761 = sbr.rel (%p1759) target = $region64
      $region63: #{a_call__.1} parent=59 // pred_region
        %s1762 = smul.u32 4, %s20
        %p1763 = scmp.lt.s32.totalorder %s1762, 7
        %s1764 = scalar_select %p1763, %s1762, 7
        %s1765 = smul.addr %s1764, 2
        %s1766 = scalar_lea.vmem %s8, %s1765
      $region64: #{a_call__.1} parent=59 // pred_fallthru
        _
    $region60: #{a_call__.1} parent=5 // pred_fallthru
      _
  $region6: #{a_call__.1} parent=0 // loop_footer
    %s18 = sadd.s32 1, %s14
  $region7: #{a_call__.1} parent=0 // loop_footer_branch
    %13 = sbr.rel target = $region3
  $region8: #{a_call__.1} parent=0 // loop_exit
    _

</llo_original>
